<compile_context>
chip_gen: v7x
topology: tpu7x:2x2x1
jax: 0.10.0
libtpu: 0.0.40
codegen_flags: <defaults>
</compile_context>

<pallas_src>
import functools
import math

import jax
import jax.numpy as jnp
from jax.experimental import pallas as pl
from jax.experimental.pallas import tpu as pltpu

LN_EPS = 1e-5


def denoiser_kernel(
    sigma_ref,   # VMEM (Bt, 1, 1)   f32   sigma per batch element
    x_ref,       # VMEM (Bt, S, Din) f32
    wex_ref,     # VMEM (Din, E)     bf16  embed weight (x cols), pre-transposed
    wen_ref,     # VMEM (1, 1, E)    f32   embed weight (c_noise column)
    wqkv_ref,    # VMEM (1, E, 3E)   bf16  pre-transposed
    bqkv_ref,    # VMEM (1, 1, 3E)   f32
    wo_ref,      # VMEM (1, E, E)    bf16  out-proj, pre-transposed
    bo_ref,      # VMEM (1, 1, E)    f32
    ln1g_ref,    # VMEM (1, 1, E)    f32
    ln1b_ref,    # VMEM (1, 1, E)    f32
    w1_ref,      # VMEM (1, E, F)    bf16  pre-transposed
    fb1_ref,     # VMEM (1, 1, F)    f32
    w2_ref,      # VMEM (1, F, E)    bf16  pre-transposed
    fb2_ref,     # VMEM (1, 1, E)    f32
    ln2g_ref,    # VMEM (1, 1, E)    f32
    ln2b_ref,    # VMEM (1, 1, E)    f32
    wout_ref,    # VMEM (E, Din)     bf16  pre-transposed
    o_ref,       # VMEM (Bt, S, Din) f32
    h_ref,       # scratch VMEM (Bt*S, E) f32 -- carried across the layer axis
    *,
    num_heads: int,
    sigma_data: float,
):
    layer = pl.program_id(1)
    n_layers = pl.num_programs(1)

    Bt, S, Din = x_ref.shape
    M = Bt * S
    E = wqkv_ref.shape[1]
    hd = E // num_heads
    scale = 1.0 / math.sqrt(hd)
    sd2 = sigma_data * sigma_data
    bf16 = jnp.bfloat16

    # ---- first layer step: EDM preconditioning + embed ---------------------
    @pl.when(layer == 0)
    def _():
        sig = sigma_ref[...]                                   # (Bt,1,1)
        c_in = jax.lax.rsqrt(sig * sig + sd2)
        c_noise = 0.25 * jnp.log(sig)
        xin = (c_in * x_ref[...]).reshape(M, Din)              # (M, Din)
        h0 = jnp.dot(xin.astype(bf16), wex_ref[...],
                     preferred_element_type=jnp.float32)       # (M, E)
        h0 = h0.reshape(Bt, S, E) + c_noise * wen_ref[...]
        h_ref[...] = h0.reshape(M, E)

    h = h_ref[...]                                             # (M, E) f32

    # Per-layer params, loaded once per grid step (hoisted broadcasts).
    wqkv = wqkv_ref[0]          # (E, 3E) bf16
    bqkv = bqkv_ref[0]          # (1, 3E) f32
    wo = wo_ref[0]              # (E, E)  bf16
    bo = bo_ref[0]              # (1, E)  f32
    g1, be1 = ln1g_ref[0], ln1b_ref[0]
    w1, fb1 = w1_ref[0], fb1_ref[0]
    w2, fb2 = w2_ref[0], fb2_ref[0]
    g2, be2 = ln2g_ref[0], ln2b_ref[0]

    def layer_norm(v, g, b):
        mu = jnp.mean(v, axis=-1, keepdims=True)
        d = v - mu
        var = jnp.mean(d * d, axis=-1, keepdims=True)
        return d * jax.lax.rsqrt(var + LN_EPS) * g + b

    # ---- self-attention (post-norm, batched over the batch tile) -----------
    qkv = jnp.dot(h.astype(bf16), wqkv,
                  preferred_element_type=jnp.float32) + bqkv   # (M, 3E)
    q = qkv[:, 0:E].reshape(Bt, S, E).astype(bf16)
    k = qkv[:, E:2 * E].reshape(Bt, S, E).astype(bf16)
    v = qkv[:, 2 * E:3 * E].reshape(Bt, S, E).astype(bf16)

    ctxs = []
    for hh in range(num_heads):
        sl = slice(hh * hd, (hh + 1) * hd)
        qh, kh, vh = q[:, :, sl], k[:, :, sl], v[:, :, sl]
        s = jnp.einsum("bqd,bkd->bqk", qh, kh,
                       preferred_element_type=jnp.float32) * scale   # (Bt,S,S)
        s = s - jnp.max(s, axis=-1, keepdims=True)
        p = jnp.exp(s)
        p = p * pl.reciprocal(jnp.sum(p, axis=-1, keepdims=True), approx=True)
        ctxs.append(jnp.einsum("bqk,bkd->bqd", p.astype(bf16), vh,
                               preferred_element_type=jnp.float32))  # (Bt,S,hd)
    # Re-assemble heads (f32, minor-dim concat) so the output projection is a
    # single (M,E)x(E,E) MXU matmul instead of num_heads K=hd matmuls.
    ctx = jnp.concatenate(ctxs, axis=-1).reshape(M, E)
    attn = jnp.dot(ctx.astype(bf16), wo,
                   preferred_element_type=jnp.float32) + bo          # (M, E)
    h = layer_norm(h + attn, g1, be1)

    # ---- feed-forward (ReLU, dim_feedforward=F) -----------------------------
    ff = jnp.dot(h.astype(bf16), w1,
                 preferred_element_type=jnp.float32) + fb1
    ff = jnp.maximum(ff, 0.0)
    ff = jnp.dot(ff.astype(bf16), w2,
                 preferred_element_type=jnp.float32) + fb2
    h = layer_norm(h + ff, g2, be2)

    h_ref[...] = h

    # ---- last layer step: output head + EDM skip combination ----------------
    @pl.when(layer == n_layers - 1)
    def _():
        f = jnp.dot(h.astype(bf16), wout_ref[...],
                    preferred_element_type=jnp.float32)        # (M, Din)
        f3 = f.reshape(Bt, S, Din)
        sig = sigma_ref[...]
        denom = sig * sig + sd2
        c_skip = sd2 / denom
        c_out = sig * sigma_data * jax.lax.rsqrt(denom)
        o_ref[...] = c_skip * x_ref[...] + c_out * f3


def denoiser_pallas(t, x, params, *, num_heads, num_layers, sigma_data,
                    block_b=None):
    B, S, Din = x.shape
    E = params["w_embed"].shape[0]
    F = params["w1"].shape[1]
    L = num_layers
    bf16 = jnp.bfloat16
    f32 = jnp.float32

    # Batch tile: fill the matmul M dimension (Bt*S rows) and amortize the
    # fixed per-grid-step overhead (~0.35us/step).
    if block_b is None:
        block_b = max(1, min(B, pl.cdiv(128, S)))
    Bt = int(block_b)
    nb = pl.cdiv(B, Bt)
    B_pad = nb * Bt

    x_p = x.astype(f32)
    t_p = t.reshape(B).astype(f32)
    if B_pad != B:
        pad = B_pad - B
        x_p = jnp.concatenate([x_p, jnp.zeros((pad, S, Din), f32)], axis=0)
        t_p = jnp.concatenate([t_p, jnp.ones((pad,), f32)], axis=0)
    sigma = t_p.reshape(B_pad, 1, 1)

    # Pre-transpose (no in-kernel .T) and cast MXU weights to bf16.
    w_embed = params["w_embed"]                                    # (E, Din+1)
    wex = w_embed[:, :Din].T.astype(bf16)                          # (Din, E)
    wen = w_embed[:, Din].reshape(1, 1, E).astype(f32)             # (1,1,E)
    wqkvT = jnp.transpose(params["wqkv"], (0, 2, 1)).astype(bf16)  # (L,E,3E)
    woT = jnp.transpose(params["wo"], (0, 2, 1)).astype(bf16)      # (L,E,E)
    w1T = jnp.transpose(params["w1"], (0, 2, 1)).astype(bf16)      # (L,E,F)
    w2T = jnp.transpose(params["w2"], (0, 2, 1)).astype(bf16)      # (L,F,E)
    woutT = params["w_out"].T.astype(bf16)                         # (E,Din)

    bqkv = params["bqkv"].astype(f32)
    bo = params["bo"].astype(f32)
    ln1g = params["ln1_g"].astype(f32)
    ln1b = params["ln1_b"].astype(f32)
    fb1 = params["b1"].astype(f32)
    fb2 = params["b2"].astype(f32)
    ln2g = params["ln2_g"].astype(f32)
    ln2b = params["ln2_b"].astype(f32)

    def batched(shape):
        return pl.BlockSpec(shape, lambda i, l: (i, 0, 0))

    def per_layer(shape):
        n = len(shape)
        return pl.BlockSpec(shape, lambda i, l, n=n: (l,) + (0,) * (n - 1))

    def const_full(shape):
        n = len(shape)
        return pl.BlockSpec(shape, lambda i, l, n=n: (0,) * n)

    in_specs = [
        batched((Bt, 1, 1)),                 # sigma
        batched((Bt, S, Din)),               # x
        const_full((Din, E)),                # wex
        const_full((1, 1, E)),               # wen
        per_layer((1, E, 3 * E)),            # wqkvT
        per_layer((1, 1, 3 * E)),            # bqkv
        per_layer((1, E, E)),                # woT
        per_layer((1, 1, E)),                # bo
        per_layer((1, 1, E)),                # ln1_g
        per_layer((1, 1, E)),                # ln1_b
        per_layer((1, E, F)),                # w1T
        per_layer((1, 1, F)),                # b1
        per_layer((1, F, E)),                # w2T
        per_layer((1, 1, E)),                # b2
        per_layer((1, 1, E)),                # ln2_g
        per_layer((1, 1, E)),                # ln2_b
        const_full((E, Din)),                # woutT
    ]
    out_spec = batched((Bt, S, Din))

    # Rough per-step VMEM footprint (blocks x double-buffer + scratch) with
    # headroom, clamped below the smallest physical VMEM (v7x: 64 MiB).
    blk_bytes = (
        4 * (Bt + 2 * Bt * S * Din)                                   # act
        + 2 * (Din * E + 3 * E * E + E * E + 2 * E * F + E * Din)     # bf16 W
        + 4 * (3 * E + 7 * E + 2 * F)                                 # f32 b/ln
    )
    scratch_bytes = Bt * S * E * 4
    vmem_limit = int(min(48 * 2 ** 20,
                         max(32 * 2 ** 20, 4 * blk_bytes + 2 * scratch_bytes)))

    kernel = functools.partial(
        denoiser_kernel, num_heads=num_heads, sigma_data=float(sigma_data))

    out = pl.pallas_call(
        kernel,
        out_shape=jax.ShapeDtypeStruct((B_pad, S, Din), jnp.float32),
        grid_spec=pltpu.PrefetchScalarGridSpec(
            num_scalar_prefetch=0,
            grid=(nb, L),
            in_specs=in_specs,
            out_specs=out_spec,
            scratch_shapes=[pltpu.VMEM((Bt * S, E), jnp.float32)],
        ),
        compiler_params=pltpu.CompilerParams(
            dimension_semantics=("parallel", "arbitrary"),
            vmem_limit_bytes=vmem_limit,
        ),
    )(sigma, x_p, wex, wen, wqkvT, bqkv, woT, bo, ln1g, ln1b,
      w1T, fb1, w2T, fb2, ln2g, ln2b, woutT)

    return out[:B] if B_pad != B else out


# ----------------------------- pure-JAX reference -----------------------------
def denoiser_ref(t, x, params, *, num_heads, num_layers, sigma_data):
    B, S, Din = x.shape
    E = params["w_embed"].shape[0]
    hd = E // num_heads
    sigma = t.reshape(B, 1, 1).astype(jnp.float32)
    sd2 = sigma_data ** 2
    c_skip = sd2 / (sigma ** 2 + sd2)
    c_in = 1.0 / jnp.sqrt(sigma ** 2 + sd2)
    c_out = sigma * sigma_data / jnp.sqrt(sigma ** 2 + sd2)
    c_noise = 0.25 * jnp.log(sigma)

    out = c_skip * x
    xin = c_in * x
    noise = jnp.ones((B, S, 1), jnp.float32) * c_noise
    xcat = jnp.concatenate([xin, noise], axis=-1)
    h = xcat @ params["w_embed"].T
    scale = 1.0 / math.sqrt(hd)

    def ln(v, g, b):
        mu = v.mean(-1, keepdims=True)
        var = ((v - mu) ** 2).mean(-1, keepdims=True)
        return (v - mu) / jnp.sqrt(var + LN_EPS) * g + b

    for l in range(num_layers):
        qkv = h @ params["wqkv"][l].T + params["bqkv"][l, 0]
        q, k, v = qkv[..., :E], qkv[..., E:2 * E], qkv[..., 2 * E:]
        q = q.reshape(B, S, num_heads, hd)
        k = k.reshape(B, S, num_heads, hd)
        v = v.reshape(B, S, num_heads, hd)
        s = jnp.einsum("bqhd,bkhd->bhqk", q, k) * scale
        p = jax.nn.softmax(s, axis=-1)
        ctx = jnp.einsum("bhqk,bkhd->bqhd", p, v).reshape(B, S, E)
        attn = ctx @ params["wo"][l].T + params["bo"][l, 0]
        h = ln(h + attn, params["ln1_g"][l, 0], params["ln1_b"][l, 0])
        ff = jax.nn.relu(h @ params["w1"][l].T + params["b1"][l, 0])
        ff = ff @ params["w2"][l].T + params["b2"][l, 0]
        h = ln(h + ff, params["ln2_g"][l, 0], params["ln2_b"][l, 0])

    F_net = h @ params["w_out"].T
    return out + c_out * F_net


def init_params(key, input_dim, embed_dim, num_heads, num_layers, ff=128):
    ks = jax.random.split(key, 9)

    def w(k, shape, scale=0.05):
        return jax.random.normal(k, shape, jnp.float32) * scale

    return {
        "w_embed": w(ks[0], (embed_dim, input_dim + 1)),
        "wqkv":    w(ks[1], (num_layers, 3 * embed_dim, embed_dim)),
        "bqkv":    w(ks[2], (num_layers, 1, 3 * embed_dim)),
        "wo":      w(ks[3], (num_layers, embed_dim, embed_dim)),
        "bo":      w(ks[4], (num_layers, 1, embed_dim)),
        "ln1_g":   jnp.ones((num_layers, 1, embed_dim), jnp.float32),
        "ln1_b":   jnp.zeros((num_layers, 1, embed_dim), jnp.float32),
        "w1":      w(ks[5], (num_layers, ff, embed_dim)),
        "b1":      w(ks[6], (num_layers, 1, ff)),
        "w2":      w(ks[7], (num_layers, embed_dim, ff)),
        "b2":      jnp.zeros((num_layers, 1, embed_dim), jnp.float32),
        "ln2_g":   jnp.ones((num_layers, 1, embed_dim), jnp.float32),
        "ln2_b":   jnp.zeros((num_layers, 1, embed_dim), jnp.float32),
        "w_out":   w(ks[8], (input_dim, embed_dim)),
    }


if __name__ == "__main__":
    # Small shapes consistent with the module's forward.
    B, S = 2, 8
    input_dim, embed_dim, num_heads, num_layers = 4, 32, 4, 2
    sigma_data = 0.5

    key = jax.random.PRNGKey(0)
    k_t, k_x, k_p = jax.random.split(key, 3)

    t = jax.random.uniform(k_t, (B,), jnp.float32, minval=0.5, maxval=1.5)
    x = jax.random.normal(k_x, (B, S, input_dim), jnp.float32)
    params = init_params(k_p, input_dim, embed_dim, num_heads, num_layers)

    out = denoiser_pallas(t, x, params, num_heads=num_heads,
                          num_layers=num_layers, sigma_data=sigma_data)
    out = jax.block_until_ready(out)

    ref = denoiser_ref(t, x, params, num_heads=num_heads,
                       num_layers=num_layers, sigma_data=sigma_data)
    assert out.shape == (B, S, input_dim)
    # bf16 MXU inputs (f32 accumulation) -> slightly looser tolerance vs the
    # pure-f32 reference.
    assert jnp.allclose(out, ref, atol=3e-2, rtol=3e-2), "mismatch vs reference"

    print("KERNEL_OK")
</pallas_src>

<mosaic_0001>
module attributes {stable_mosaic.version = 11 : i64} {
  func.func @denoiser_kernel(%arg0: i32, %arg1: i32, %arg2: memref<2x1x1xf32, #tpu.memory_space<vmem>>, %arg3: memref<2x8x4xf32, #tpu.memory_space<vmem>>, %arg4: memref<4x32xbf16, #tpu.memory_space<vmem>>, %arg5: memref<1x1x32xf32, #tpu.memory_space<vmem>>, %arg6: memref<1x32x96xbf16, #tpu.memory_space<vmem>>, %arg7: memref<1x1x96xf32, #tpu.memory_space<vmem>>, %arg8: memref<1x32x32xbf16, #tpu.memory_space<vmem>>, %arg9: memref<1x1x32xf32, #tpu.memory_space<vmem>>, %arg10: memref<1x1x32xf32, #tpu.memory_space<vmem>>, %arg11: memref<1x1x32xf32, #tpu.memory_space<vmem>>, %arg12: memref<1x32x128xbf16, #tpu.memory_space<vmem>>, %arg13: memref<1x1x128xf32, #tpu.memory_space<vmem>>, %arg14: memref<1x128x32xbf16, #tpu.memory_space<vmem>>, %arg15: memref<1x1x32xf32, #tpu.memory_space<vmem>>, %arg16: memref<1x1x32xf32, #tpu.memory_space<vmem>>, %arg17: memref<1x1x32xf32, #tpu.memory_space<vmem>>, %arg18: memref<32x4xbf16, #tpu.memory_space<vmem>>, %arg19: memref<2x8x4xf32, #tpu.memory_space<vmem>>, %arg20: memref<16x32xf32, #tpu.memory_space<vmem>>) attributes {dimension_semantics = [#tpu.dimension_semantics<parallel>, #tpu.dimension_semantics<arbitrary>], iteration_bounds = array<i64: 1, 2>, scalar_prefetch = 0 : i64, scratch_operands = 1 : i64, tpu.core_type = #tpu.core_type<tc>, window_params = [{transform_indices = @transform_0, window_bounds = array<i64: 2, 1, 1>}, {transform_indices = @transform_1, window_bounds = array<i64: 2, 8, 4>}, {pipeline_mode = #tpu.pipeline_mode<synchronous>, transform_indices = @transform_2, window_bounds = array<i64: 4, 32>}, {pipeline_mode = #tpu.pipeline_mode<synchronous>, transform_indices = @transform_3, window_bounds = array<i64: 1, 1, 32>}, {transform_indices = @transform_4, window_bounds = array<i64: 1, 32, 96>}, {transform_indices = @transform_5, window_bounds = array<i64: 1, 1, 96>}, {transform_indices = @transform_6, window_bounds = array<i64: 1, 32, 32>}, {transform_indices = @transform_7, window_bounds = array<i64: 1, 1, 32>}, {transform_indices = @transform_8, window_bounds = array<i64: 1, 1, 32>}, {transform_indices = @transform_9, window_bounds = array<i64: 1, 1, 32>}, {transform_indices = @transform_10, window_bounds = array<i64: 1, 32, 128>}, {transform_indices = @transform_11, window_bounds = array<i64: 1, 1, 128>}, {transform_indices = @transform_12, window_bounds = array<i64: 1, 128, 32>}, {transform_indices = @transform_13, window_bounds = array<i64: 1, 1, 32>}, {transform_indices = @transform_14, window_bounds = array<i64: 1, 1, 32>}, {transform_indices = @transform_15, window_bounds = array<i64: 1, 1, 32>}, {pipeline_mode = #tpu.pipeline_mode<synchronous>, transform_indices = @transform_16, window_bounds = array<i64: 32, 4>}, {transform_indices = @transform_17, window_bounds = array<i64: 2, 8, 4>}]} {
    %c0_i32 = arith.constant 0 : i32
    %0 = arith.cmpi eq, %arg1, %c0_i32 : i32
    %1 = arith.extui %0 : i1 to i32
    %c0_i32_0 = arith.constant 0 : i32
    %2 = arith.cmpi ne, %1, %c0_i32_0 : i32
    scf.if %2 {
      %c0_75 = arith.constant 0 : index
      %c0_76 = arith.constant 0 : index
      %c0_77 = arith.constant 0 : index
      %175 = vector.load %arg2[%c0_75, %c0_76, %c0_77] : memref<2x1x1xf32, #tpu.memory_space<vmem>>, vector<2x1x1xf32>
      %176 = arith.mulf %175, %175 : vector<2x1x1xf32>
      %cst_78 = arith.constant 2.500000e-01 : f32
      %177 = vector.broadcast %cst_78 : f32 to vector<2x1x1xf32>
      %178 = arith.addf %176, %177 : vector<2x1x1xf32>
      %179 = math.rsqrt %178 : vector<2x1x1xf32>
      %180 = math.log %175 : vector<2x1x1xf32>
      %cst_79 = arith.constant 2.500000e-01 : f32
      %181 = vector.broadcast %cst_79 : f32 to vector<2x1x1xf32>
      %182 = arith.mulf %181, %180 : vector<2x1x1xf32>
      %c0_80 = arith.constant 0 : index
      %c0_81 = arith.constant 0 : index
      %c0_82 = arith.constant 0 : index
      %183 = vector.load %arg3[%c0_80, %c0_81, %c0_82] : memref<2x8x4xf32, #tpu.memory_space<vmem>>, vector<2x8x4xf32>
      %184 = vector.broadcast %179 : vector<2x1x1xf32> to vector<2x8x4xf32>
      %185 = arith.mulf %184, %183 : vector<2x8x4xf32>
      %186 = vector.shape_cast %185 : vector<2x8x4xf32> to vector<16x4xf32>
      %187 = arith.truncf %186 : vector<16x4xf32> to vector<16x4xbf16>
      %c0_83 = arith.constant 0 : index
      %c0_84 = arith.constant 0 : index
      %188 = vector.load %arg4[%c0_83, %c0_84] : memref<4x32xbf16, #tpu.memory_space<vmem>>, vector<4x32xbf16>
      %cst_85 = arith.constant dense<0.000000e+00> : vector<16x32xf32>
      %189 = tpu.matmul %187, %188, %cst_85 {dimension_numbers = #tpu.dot_dimension_numbers<[1], [0], [0], [1], [0, 0, 1, 1], [], []>} : vector<16x4xbf16>, vector<4x32xbf16>, vector<16x32xf32> -> vector<16x32xf32>
      %190 = vector.shape_cast %189 : vector<16x32xf32> to vector<2x8x32xf32>
      %c0_86 = arith.constant 0 : index
      %c0_87 = arith.constant 0 : index
      %c0_88 = arith.constant 0 : index
      %191 = vector.load %arg5[%c0_86, %c0_87, %c0_88] : memref<1x1x32xf32, #tpu.memory_space<vmem>>, vector<1x1x32xf32>
      %192 = vector.broadcast %182 : vector<2x1x1xf32> to vector<2x1x32xf32>
      %193 = vector.broadcast %191 : vector<1x1x32xf32> to vector<2x1x32xf32>
      %194 = arith.mulf %192, %193 : vector<2x1x32xf32>
      %195 = vector.broadcast %194 : vector<2x1x32xf32> to vector<2x8x32xf32>
      %196 = arith.addf %190, %195 : vector<2x8x32xf32>
      %197 = vector.shape_cast %196 : vector<2x8x32xf32> to vector<16x32xf32>
      %c0_89 = arith.constant 0 : index
      %c0_90 = arith.constant 0 : index
      %198 = vector.load %arg20[%c0_89, %c0_90] : memref<16x32xf32, #tpu.memory_space<vmem>>, vector<16x32xf32>
      tpu.vector_store %arg20[%c0_89, %c0_90], %197 {strides = array<i32>} : memref<16x32xf32, #tpu.memory_space<vmem>>, vector<16x32xf32>,
    } else {
    }
    %c0 = arith.constant 0 : index
    %c0_1 = arith.constant 0 : index
    %3 = vector.load %arg20[%c0, %c0_1] : memref<16x32xf32, #tpu.memory_space<vmem>>, vector<16x32xf32>
    %c0_2 = arith.constant 0 : index
    %c0_3 = arith.constant 0 : index
    %c0_4 = arith.constant 0 : index
    %4 = vector.load %arg6[%c0_2, %c0_3, %c0_4] : memref<1x32x96xbf16, #tpu.memory_space<vmem>>, vector<1x32x96xbf16>
    %5 = vector.shape_cast %4 : vector<1x32x96xbf16> to vector<32x96xbf16>
    %c0_5 = arith.constant 0 : index
    %c0_6 = arith.constant 0 : index
    %c0_7 = arith.constant 0 : index
    %6 = vector.load %arg7[%c0_5, %c0_6, %c0_7] : memref<1x1x96xf32, #tpu.memory_space<vmem>>, vector<1x1x96xf32>
    %7 = vector.shape_cast %6 : vector<1x1x96xf32> to vector<1x96xf32>
    %c0_8 = arith.constant 0 : index
    %c0_9 = arith.constant 0 : index
    %c0_10 = arith.constant 0 : index
    %8 = vector.load %arg8[%c0_8, %c0_9, %c0_10] : memref<1x32x32xbf16, #tpu.memory_space<vmem>>, vector<1x32x32xbf16>
    %9 = vector.shape_cast %8 : vector<1x32x32xbf16> to vector<32x32xbf16>
    %c0_11 = arith.constant 0 : index
    %c0_12 = arith.constant 0 : index
    %c0_13 = arith.constant 0 : index
    %10 = vector.load %arg9[%c0_11, %c0_12, %c0_13] : memref<1x1x32xf32, #tpu.memory_space<vmem>>, vector<1x1x32xf32>
    %11 = vector.shape_cast %10 : vector<1x1x32xf32> to vector<1x32xf32>
    %c0_14 = arith.constant 0 : index
    %c0_15 = arith.constant 0 : index
    %c0_16 = arith.constant 0 : index
    %12 = vector.load %arg10[%c0_14, %c0_15, %c0_16] : memref<1x1x32xf32, #tpu.memory_space<vmem>>, vector<1x1x32xf32>
    %13 = vector.shape_cast %12 : vector<1x1x32xf32> to vector<1x32xf32>
    %c0_17 = arith.constant 0 : index
    %c0_18 = arith.constant 0 : index
    %c0_19 = arith.constant 0 : index
    %14 = vector.load %arg11[%c0_17, %c0_18, %c0_19] : memref<1x1x32xf32, #tpu.memory_space<vmem>>, vector<1x1x32xf32>
    %15 = vector.shape_cast %14 : vector<1x1x32xf32> to vector<1x32xf32>
    %c0_20 = arith.constant 0 : index
    %c0_21 = arith.constant 0 : index
    %c0_22 = arith.constant 0 : index
    %16 = vector.load %arg12[%c0_20, %c0_21, %c0_22] : memref<1x32x128xbf16, #tpu.memory_space<vmem>>, vector<1x32x128xbf16>
    %17 = vector.shape_cast %16 : vector<1x32x128xbf16> to vector<32x128xbf16>
    %c0_23 = arith.constant 0 : index
    %c0_24 = arith.constant 0 : index
    %c0_25 = arith.constant 0 : index
    %18 = vector.load %arg13[%c0_23, %c0_24, %c0_25] : memref<1x1x128xf32, #tpu.memory_space<vmem>>, vector<1x1x128xf32>
    %19 = vector.shape_cast %18 : vector<1x1x128xf32> to vector<1x128xf32>
    %c0_26 = arith.constant 0 : index
    %c0_27 = arith.constant 0 : index
    %c0_28 = arith.constant 0 : index
    %20 = vector.load %arg14[%c0_26, %c0_27, %c0_28] : memref<1x128x32xbf16, #tpu.memory_space<vmem>>, vector<1x128x32xbf16>
    %21 = vector.shape_cast %20 : vector<1x128x32xbf16> to vector<128x32xbf16>
    %c0_29 = arith.constant 0 : index
    %c0_30 = arith.constant 0 : index
    %c0_31 = arith.constant 0 : index
    %22 = vector.load %arg15[%c0_29, %c0_30, %c0_31] : memref<1x1x32xf32, #tpu.memory_space<vmem>>, vector<1x1x32xf32>
    %23 = vector.shape_cast %22 : vector<1x1x32xf32> to vector<1x32xf32>
    %c0_32 = arith.constant 0 : index
    %c0_33 = arith.constant 0 : index
    %c0_34 = arith.constant 0 : index
    %24 = vector.load %arg16[%c0_32, %c0_33, %c0_34] : memref<1x1x32xf32, #tpu.memory_space<vmem>>, vector<1x1x32xf32>
    %25 = vector.shape_cast %24 : vector<1x1x32xf32> to vector<1x32xf32>
    %c0_35 = arith.constant 0 : index
    %c0_36 = arith.constant 0 : index
    %c0_37 = arith.constant 0 : index
    %26 = vector.load %arg17[%c0_35, %c0_36, %c0_37] : memref<1x1x32xf32, #tpu.memory_space<vmem>>, vector<1x1x32xf32>
    %27 = vector.shape_cast %26 : vector<1x1x32xf32> to vector<1x32xf32>
    %28 = arith.truncf %3 : vector<16x32xf32> to vector<16x32xbf16>
    %cst = arith.constant dense<0.000000e+00> : vector<16x96xf32>
    %29 = tpu.matmul %28, %5, %cst {dimension_numbers = #tpu.dot_dimension_numbers<[1], [0], [0], [1], [0, 0, 1, 1], [], []>} : vector<16x32xbf16>, vector<32x96xbf16>, vector<16x96xf32> -> vector<16x96xf32>
    %30 = vector.broadcast %7 : vector<1x96xf32> to vector<16x96xf32>
    %31 = arith.addf %29, %30 : vector<16x96xf32>
    %32 = vector.extract_strided_slice %31 {offsets = [0, 0], sizes = [16, 32], strides = [1, 1]} : vector<16x96xf32> to vector<16x32xf32>
    %33 = vector.shape_cast %32 : vector<16x32xf32> to vector<2x8x32xf32>
    %34 = arith.truncf %33 : vector<2x8x32xf32> to vector<2x8x32xbf16>
    %35 = vector.extract_strided_slice %31 {offsets = [0, 32], sizes = [16, 32], strides = [1, 1]} : vector<16x96xf32> to vector<16x32xf32>
    %36 = vector.shape_cast %35 : vector<16x32xf32> to vector<2x8x32xf32>
    %37 = arith.truncf %36 : vector<2x8x32xf32> to vector<2x8x32xbf16>
    %38 = vector.extract_strided_slice %31 {offsets = [0, 64], sizes = [16, 32], strides = [1, 1]} : vector<16x96xf32> to vector<16x32xf32>
    %39 = vector.shape_cast %38 : vector<16x32xf32> to vector<2x8x32xf32>
    %40 = arith.truncf %39 : vector<2x8x32xf32> to vector<2x8x32xbf16>
    %41 = vector.extract_strided_slice %34 {offsets = [0, 0, 0], sizes = [2, 8, 8], strides = [1, 1, 1]} : vector<2x8x32xbf16> to vector<2x8x8xbf16>
    %42 = vector.extract_strided_slice %37 {offsets = [0, 0, 0], sizes = [2, 8, 8], strides = [1, 1, 1]} : vector<2x8x32xbf16> to vector<2x8x8xbf16>
    %43 = vector.extract_strided_slice %40 {offsets = [0, 0, 0], sizes = [2, 8, 8], strides = [1, 1, 1]} : vector<2x8x32xbf16> to vector<2x8x8xbf16>
    "tpu.trace_start"() <{level = 10 : i32, message = "bqd,bkd->bqk"}> : () -> ()
    %cst_38 = arith.constant dense<0.000000e+00> : vector<2x8x8xf32>
    %44 = tpu.matmul %41, %42, %cst_38 {dimension_numbers = #tpu.dot_dimension_numbers<[2], [2], [1], [1], [0, 0, 0, 1, 1, 1], [0], [0]>} : vector<2x8x8xbf16>, vector<2x8x8xbf16>, vector<2x8x8xf32> -> vector<2x8x8xf32>
    "tpu.trace_stop"() : () -> ()
    %cst_39 = arith.constant 0.353553385 : f32
    %45 = vector.broadcast %cst_39 : f32 to vector<2x8x8xf32>
    %46 = arith.mulf %44, %45 : vector<2x8x8xf32>
    %cst_40 = arith.constant dense<0xFF800000> : vector<2x8xf32>
    %47 = vector.multi_reduction <maximumf>, %46, %cst_40 [2] : vector<2x8x8xf32> to vector<2x8xf32>
    %48 = vector.shape_cast %47 : vector<2x8xf32> to vector<2x8x1xf32>
    %49 = vector.broadcast %48 : vector<2x8x1xf32> to vector<2x8x8xf32>
    %50 = arith.subf %46, %49 : vector<2x8x8xf32>
    %51 = math.exp %50 : vector<2x8x8xf32>
    %cst_41 = arith.constant dense<0.000000e+00> : vector<2x8xf32>
    %52 = vector.multi_reduction <add>, %51, %cst_41 [2] : vector<2x8x8xf32> to vector<2x8xf32>
    %53 = vector.shape_cast %52 : vector<2x8xf32> to vector<2x8x1xf32>
    %54 = tpu.reciprocal %53 {approx = true} : vector<2x8x1xf32> -> vector<2x8x1xf32>
    %55 = vector.broadcast %54 : vector<2x8x1xf32> to vector<2x8x8xf32>
    %56 = arith.mulf %51, %55 : vector<2x8x8xf32>
    %57 = arith.truncf %56 : vector<2x8x8xf32> to vector<2x8x8xbf16>
    "tpu.trace_start"() <{level = 10 : i32, message = "bqk,bkd->bqd"}> : () -> ()
    %cst_42 = arith.constant dense<0.000000e+00> : vector<2x8x8xf32>
    %58 = tpu.matmul %57, %43, %cst_42 {dimension_numbers = #tpu.dot_dimension_numbers<[2], [1], [1], [2], [0, 0, 0, 1, 1, 2], [0], [0]>} : vector<2x8x8xbf16>, vector<2x8x8xbf16>, vector<2x8x8xf32> -> vector<2x8x8xf32>
    "tpu.trace_stop"() : () -> ()
    %59 = vector.extract_strided_slice %34 {offsets = [0, 0, 8], sizes = [2, 8, 8], strides = [1, 1, 1]} : vector<2x8x32xbf16> to vector<2x8x8xbf16>
    %60 = vector.extract_strided_slice %37 {offsets = [0, 0, 8], sizes = [2, 8, 8], strides = [1, 1, 1]} : vector<2x8x32xbf16> to vector<2x8x8xbf16>
    %61 = vector.extract_strided_slice %40 {offsets = [0, 0, 8], sizes = [2, 8, 8], strides = [1, 1, 1]} : vector<2x8x32xbf16> to vector<2x8x8xbf16>
    "tpu.trace_start"() <{level = 10 : i32, message = "bqd,bkd->bqk"}> : () -> ()
    %cst_43 = arith.constant dense<0.000000e+00> : vector<2x8x8xf32>
    %62 = tpu.matmul %59, %60, %cst_43 {dimension_numbers = #tpu.dot_dimension_numbers<[2], [2], [1], [1], [0, 0, 0, 1, 1, 1], [0], [0]>} : vector<2x8x8xbf16>, vector<2x8x8xbf16>, vector<2x8x8xf32> -> vector<2x8x8xf32>
    "tpu.trace_stop"() : () -> ()
    %cst_44 = arith.constant 0.353553385 : f32
    %63 = vector.broadcast %cst_44 : f32 to vector<2x8x8xf32>
    %64 = arith.mulf %62, %63 : vector<2x8x8xf32>
    %cst_45 = arith.constant dense<0xFF800000> : vector<2x8xf32>
    %65 = vector.multi_reduction <maximumf>, %64, %cst_45 [2] : vector<2x8x8xf32> to vector<2x8xf32>
    %66 = vector.shape_cast %65 : vector<2x8xf32> to vector<2x8x1xf32>
    %67 = vector.broadcast %66 : vector<2x8x1xf32> to vector<2x8x8xf32>
    %68 = arith.subf %64, %67 : vector<2x8x8xf32>
    %69 = math.exp %68 : vector<2x8x8xf32>
    %cst_46 = arith.constant dense<0.000000e+00> : vector<2x8xf32>
    %70 = vector.multi_reduction <add>, %69, %cst_46 [2] : vector<2x8x8xf32> to vector<2x8xf32>
    %71 = vector.shape_cast %70 : vector<2x8xf32> to vector<2x8x1xf32>
    %72 = tpu.reciprocal %71 {approx = true} : vector<2x8x1xf32> -> vector<2x8x1xf32>
    %73 = vector.broadcast %72 : vector<2x8x1xf32> to vector<2x8x8xf32>
    %74 = arith.mulf %69, %73 : vector<2x8x8xf32>
    %75 = arith.truncf %74 : vector<2x8x8xf32> to vector<2x8x8xbf16>
    "tpu.trace_start"() <{level = 10 : i32, message = "bqk,bkd->bqd"}> : () -> ()
    %cst_47 = arith.constant dense<0.000000e+00> : vector<2x8x8xf32>
    %76 = tpu.matmul %75, %61, %cst_47 {dimension_numbers = #tpu.dot_dimension_numbers<[2], [1], [1], [2], [0, 0, 0, 1, 1, 2], [0], [0]>} : vector<2x8x8xbf16>, vector<2x8x8xbf16>, vector<2x8x8xf32> -> vector<2x8x8xf32>
    "tpu.trace_stop"() : () -> ()
    %77 = vector.extract_strided_slice %34 {offsets = [0, 0, 16], sizes = [2, 8, 8], strides = [1, 1, 1]} : vector<2x8x32xbf16> to vector<2x8x8xbf16>
    %78 = vector.extract_strided_slice %37 {offsets = [0, 0, 16], sizes = [2, 8, 8], strides = [1, 1, 1]} : vector<2x8x32xbf16> to vector<2x8x8xbf16>
    %79 = vector.extract_strided_slice %40 {offsets = [0, 0, 16], sizes = [2, 8, 8], strides = [1, 1, 1]} : vector<2x8x32xbf16> to vector<2x8x8xbf16>
    "tpu.trace_start"() <{level = 10 : i32, message = "bqd,bkd->bqk"}> : () -> ()
    %cst_48 = arith.constant dense<0.000000e+00> : vector<2x8x8xf32>
    %80 = tpu.matmul %77, %78, %cst_48 {dimension_numbers = #tpu.dot_dimension_numbers<[2], [2], [1], [1], [0, 0, 0, 1, 1, 1], [0], [0]>} : vector<2x8x8xbf16>, vector<2x8x8xbf16>, vector<2x8x8xf32> -> vector<2x8x8xf32>
    "tpu.trace_stop"() : () -> ()
    %cst_49 = arith.constant 0.353553385 : f32
    %81 = vector.broadcast %cst_49 : f32 to vector<2x8x8xf32>
    %82 = arith.mulf %80, %81 : vector<2x8x8xf32>
    %cst_50 = arith.constant dense<0xFF800000> : vector<2x8xf32>
    %83 = vector.multi_reduction <maximumf>, %82, %cst_50 [2] : vector<2x8x8xf32> to vector<2x8xf32>
    %84 = vector.shape_cast %83 : vector<2x8xf32> to vector<2x8x1xf32>
    %85 = vector.broadcast %84 : vector<2x8x1xf32> to vector<2x8x8xf32>
    %86 = arith.subf %82, %85 : vector<2x8x8xf32>
    %87 = math.exp %86 : vector<2x8x8xf32>
    %cst_51 = arith.constant dense<0.000000e+00> : vector<2x8xf32>
    %88 = vector.multi_reduction <add>, %87, %cst_51 [2] : vector<2x8x8xf32> to vector<2x8xf32>
    %89 = vector.shape_cast %88 : vector<2x8xf32> to vector<2x8x1xf32>
    %90 = tpu.reciprocal %89 {approx = true} : vector<2x8x1xf32> -> vector<2x8x1xf32>
    %91 = vector.broadcast %90 : vector<2x8x1xf32> to vector<2x8x8xf32>
    %92 = arith.mulf %87, %91 : vector<2x8x8xf32>
    %93 = arith.truncf %92 : vector<2x8x8xf32> to vector<2x8x8xbf16>
    "tpu.trace_start"() <{level = 10 : i32, message = "bqk,bkd->bqd"}> : () -> ()
    %cst_52 = arith.constant dense<0.000000e+00> : vector<2x8x8xf32>
    %94 = tpu.matmul %93, %79, %cst_52 {dimension_numbers = #tpu.dot_dimension_numbers<[2], [1], [1], [2], [0, 0, 0, 1, 1, 2], [0], [0]>} : vector<2x8x8xbf16>, vector<2x8x8xbf16>, vector<2x8x8xf32> -> vector<2x8x8xf32>
    "tpu.trace_stop"() : () -> ()
    %95 = vector.extract_strided_slice %34 {offsets = [0, 0, 24], sizes = [2, 8, 8], strides = [1, 1, 1]} : vector<2x8x32xbf16> to vector<2x8x8xbf16>
    %96 = vector.extract_strided_slice %37 {offsets = [0, 0, 24], sizes = [2, 8, 8], strides = [1, 1, 1]} : vector<2x8x32xbf16> to vector<2x8x8xbf16>
    %97 = vector.extract_strided_slice %40 {offsets = [0, 0, 24], sizes = [2, 8, 8], strides = [1, 1, 1]} : vector<2x8x32xbf16> to vector<2x8x8xbf16>
    "tpu.trace_start"() <{level = 10 : i32, message = "bqd,bkd->bqk"}> : () -> ()
    %cst_53 = arith.constant dense<0.000000e+00> : vector<2x8x8xf32>
    %98 = tpu.matmul %95, %96, %cst_53 {dimension_numbers = #tpu.dot_dimension_numbers<[2], [2], [1], [1], [0, 0, 0, 1, 1, 1], [0], [0]>} : vector<2x8x8xbf16>, vector<2x8x8xbf16>, vector<2x8x8xf32> -> vector<2x8x8xf32>
    "tpu.trace_stop"() : () -> ()
    %cst_54 = arith.constant 0.353553385 : f32
    %99 = vector.broadcast %cst_54 : f32 to vector<2x8x8xf32>
    %100 = arith.mulf %98, %99 : vector<2x8x8xf32>
    %cst_55 = arith.constant dense<0xFF800000> : vector<2x8xf32>
    %101 = vector.multi_reduction <maximumf>, %100, %cst_55 [2] : vector<2x8x8xf32> to vector<2x8xf32>
    %102 = vector.shape_cast %101 : vector<2x8xf32> to vector<2x8x1xf32>
    %103 = vector.broadcast %102 : vector<2x8x1xf32> to vector<2x8x8xf32>
    %104 = arith.subf %100, %103 : vector<2x8x8xf32>
    %105 = math.exp %104 : vector<2x8x8xf32>
    %cst_56 = arith.constant dense<0.000000e+00> : vector<2x8xf32>
    %106 = vector.multi_reduction <add>, %105, %cst_56 [2] : vector<2x8x8xf32> to vector<2x8xf32>
    %107 = vector.shape_cast %106 : vector<2x8xf32> to vector<2x8x1xf32>
    %108 = tpu.reciprocal %107 {approx = true} : vector<2x8x1xf32> -> vector<2x8x1xf32>
    %109 = vector.broadcast %108 : vector<2x8x1xf32> to vector<2x8x8xf32>
    %110 = arith.mulf %105, %109 : vector<2x8x8xf32>
    %111 = arith.truncf %110 : vector<2x8x8xf32> to vector<2x8x8xbf16>
    "tpu.trace_start"() <{level = 10 : i32, message = "bqk,bkd->bqd"}> : () -> ()
    %cst_57 = arith.constant dense<0.000000e+00> : vector<2x8x8xf32>
    %112 = tpu.matmul %111, %97, %cst_57 {dimension_numbers = #tpu.dot_dimension_numbers<[2], [1], [1], [2], [0, 0, 0, 1, 1, 2], [0], [0]>} : vector<2x8x8xbf16>, vector<2x8x8xbf16>, vector<2x8x8xf32> -> vector<2x8x8xf32>
    "tpu.trace_stop"() : () -> ()
    %113 = tpu.concatenate %58, %76, %94, %112 in 2 : vector<2x8x8xf32>, vector<2x8x8xf32>, vector<2x8x8xf32>, vector<2x8x8xf32> -> vector<2x8x32xf32>
    %114 = vector.shape_cast %113 : vector<2x8x32xf32> to vector<16x32xf32>
    %115 = arith.truncf %114 : vector<16x32xf32> to vector<16x32xbf16>
    %cst_58 = arith.constant dense<0.000000e+00> : vector<16x32xf32>
    %116 = tpu.matmul %115, %9, %cst_58 {dimension_numbers = #tpu.dot_dimension_numbers<[1], [0], [0], [1], [0, 0, 1, 1], [], []>} : vector<16x32xbf16>, vector<32x32xbf16>, vector<16x32xf32> -> vector<16x32xf32>
    %117 = vector.broadcast %11 : vector<1x32xf32> to vector<16x32xf32>
    %118 = arith.addf %116, %117 : vector<16x32xf32>
    %119 = arith.addf %3, %118 : vector<16x32xf32>
    %cst_59 = arith.constant dense<0.000000e+00> : vector<16xf32>
    %120 = vector.multi_reduction <add>, %119, %cst_59 [1] : vector<16x32xf32> to vector<16xf32>
    %121 = vector.shape_cast %120 : vector<16xf32> to vector<16x1xf32>
    %cst_60 = arith.constant 3.200000e+01 : f32
    %122 = vector.broadcast %cst_60 : f32 to vector<16x1xf32>
    %123 = arith.divf %121, %122 : vector<16x1xf32>
    %124 = vector.broadcast %123 : vector<16x1xf32> to vector<16x32xf32>
    %125 = arith.subf %119, %124 : vector<16x32xf32>
    %126 = arith.mulf %125, %125 : vector<16x32xf32>
    %cst_61 = arith.constant dense<0.000000e+00> : vector<16xf32>
    %127 = vector.multi_reduction <add>, %126, %cst_61 [1] : vector<16x32xf32> to vector<16xf32>
    %128 = vector.shape_cast %127 : vector<16xf32> to vector<16x1xf32>
    %cst_62 = arith.constant 3.200000e+01 : f32
    %129 = vector.broadcast %cst_62 : f32 to vector<16x1xf32>
    %130 = arith.divf %128, %129 : vector<16x1xf32>
    %cst_63 = arith.constant 9.99999974E-6 : f32
    %131 = vector.broadcast %cst_63 : f32 to vector<16x1xf32>
    %132 = arith.addf %130, %131 : vector<16x1xf32>
    %133 = math.rsqrt %132 : vector<16x1xf32>
    %134 = vector.broadcast %133 : vector<16x1xf32> to vector<16x32xf32>
    %135 = arith.mulf %125, %134 : vector<16x32xf32>
    %136 = vector.broadcast %13 : vector<1x32xf32> to vector<16x32xf32>
    %137 = arith.mulf %135, %136 : vector<16x32xf32>
    %138 = vector.broadcast %15 : vector<1x32xf32> to vector<16x32xf32>
    %139 = arith.addf %137, %138 : vector<16x32xf32>
    %140 = arith.truncf %139 : vector<16x32xf32> to vector<16x32xbf16>
    %cst_64 = arith.constant dense<0.000000e+00> : vector<16x128xf32>
    %141 = tpu.matmul %140, %17, %cst_64 {dimension_numbers = #tpu.dot_dimension_numbers<[1], [0], [0], [1], [0, 0, 1, 1], [], []>} : vector<16x32xbf16>, vector<32x128xbf16>, vector<16x128xf32> -> vector<16x128xf32>
    %142 = vector.broadcast %19 : vector<1x128xf32> to vector<16x128xf32>
    %143 = arith.addf %141, %142 : vector<16x128xf32>
    %cst_65 = arith.constant 0.000000e+00 : f32
    %144 = vector.broadcast %cst_65 : f32 to vector<16x128xf32>
    %145 = arith.maximumf %143, %144 : vector<16x128xf32>
    %146 = arith.truncf %145 : vector<16x128xf32> to vector<16x128xbf16>
    %cst_66 = arith.constant dense<0.000000e+00> : vector<16x32xf32>
    %147 = tpu.matmul %146, %21, %cst_66 {dimension_numbers = #tpu.dot_dimension_numbers<[1], [0], [0], [1], [0, 0, 1, 1], [], []>} : vector<16x128xbf16>, vector<128x32xbf16>, vector<16x32xf32> -> vector<16x32xf32>
    %148 = vector.broadcast %23 : vector<1x32xf32> to vector<16x32xf32>
    %149 = arith.addf %147, %148 : vector<16x32xf32>
    %150 = arith.addf %139, %149 : vector<16x32xf32>
    %cst_67 = arith.constant dense<0.000000e+00> : vector<16xf32>
    %151 = vector.multi_reduction <add>, %150, %cst_67 [1] : vector<16x32xf32> to vector<16xf32>
    %152 = vector.shape_cast %151 : vector<16xf32> to vector<16x1xf32>
    %cst_68 = arith.constant 3.200000e+01 : f32
    %153 = vector.broadcast %cst_68 : f32 to vector<16x1xf32>
    %154 = arith.divf %152, %153 : vector<16x1xf32>
    %155 = vector.broadcast %154 : vector<16x1xf32> to vector<16x32xf32>
    %156 = arith.subf %150, %155 : vector<16x32xf32>
    %157 = arith.mulf %156, %156 : vector<16x32xf32>
    %cst_69 = arith.constant dense<0.000000e+00> : vector<16xf32>
    %158 = vector.multi_reduction <add>, %157, %cst_69 [1] : vector<16x32xf32> to vector<16xf32>
    %159 = vector.shape_cast %158 : vector<16xf32> to vector<16x1xf32>
    %cst_70 = arith.constant 3.200000e+01 : f32
    %160 = vector.broadcast %cst_70 : f32 to vector<16x1xf32>
    %161 = arith.divf %159, %160 : vector<16x1xf32>
    %cst_71 = arith.constant 9.99999974E-6 : f32
    %162 = vector.broadcast %cst_71 : f32 to vector<16x1xf32>
    %163 = arith.addf %161, %162 : vector<16x1xf32>
    %164 = math.rsqrt %163 : vector<16x1xf32>
    %165 = vector.broadcast %164 : vector<16x1xf32> to vector<16x32xf32>
    %166 = arith.mulf %156, %165 : vector<16x32xf32>
    %167 = vector.broadcast %25 : vector<1x32xf32> to vector<16x32xf32>
    %168 = arith.mulf %166, %167 : vector<16x32xf32>
    %169 = vector.broadcast %27 : vector<1x32xf32> to vector<16x32xf32>
    %170 = arith.addf %168, %169 : vector<16x32xf32>
    %c0_72 = arith.constant 0 : index
    %c0_73 = arith.constant 0 : index
    %171 = vector.load %arg20[%c0_72, %c0_73] : memref<16x32xf32, #tpu.memory_space<vmem>>, vector<16x32xf32>
    tpu.vector_store %arg20[%c0_72, %c0_73], %170 {strides = array<i32>} : memref<16x32xf32, #tpu.memory_space<vmem>>, vector<16x32xf32>,
    %c1_i32 = arith.constant 1 : i32
    %172 = arith.cmpi eq, %arg1, %c1_i32 : i32
    %173 = arith.extui %172 : i1 to i32
    %c0_i32_74 = arith.constant 0 : i32
    %174 = arith.cmpi ne, %173, %c0_i32_74 : i32
    scf.if %174 {
      %175 = arith.truncf %170 : vector<16x32xf32> to vector<16x32xbf16>
      %c0_75 = arith.constant 0 : index
      %c0_76 = arith.constant 0 : index
      %176 = vector.load %arg18[%c0_75, %c0_76] : memref<32x4xbf16, #tpu.memory_space<vmem>>, vector<32x4xbf16>
      %cst_77 = arith.constant dense<0.000000e+00> : vector<16x4xf32>
      %177 = tpu.matmul %175, %176, %cst_77 {dimension_numbers = #tpu.dot_dimension_numbers<[1], [0], [0], [1], [0, 0, 1, 1], [], []>} : vector<16x32xbf16>, vector<32x4xbf16>, vector<16x4xf32> -> vector<16x4xf32>
      %178 = vector.shape_cast %177 : vector<16x4xf32> to vector<2x8x4xf32>
      %c0_78 = arith.constant 0 : index
      %c0_79 = arith.constant 0 : index
      %c0_80 = arith.constant 0 : index
      %179 = vector.load %arg2[%c0_78, %c0_79, %c0_80] : memref<2x1x1xf32, #tpu.memory_space<vmem>>, vector<2x1x1xf32>
      %180 = arith.mulf %179, %179 : vector<2x1x1xf32>
      %cst_81 = arith.constant 2.500000e-01 : f32
      %181 = vector.broadcast %cst_81 : f32 to vector<2x1x1xf32>
      %182 = arith.addf %180, %181 : vector<2x1x1xf32>
      %cst_82 = arith.constant 2.500000e-01 : f32
      %183 = vector.broadcast %cst_82 : f32 to vector<2x1x1xf32>
      %184 = arith.divf %183, %182 : vector<2x1x1xf32>
      %cst_83 = arith.constant 5.000000e-01 : f32
      %185 = vector.broadcast %cst_83 : f32 to vector<2x1x1xf32>
      %186 = arith.mulf %179, %185 : vector<2x1x1xf32>
      %187 = math.rsqrt %182 : vector<2x1x1xf32>
      %188 = arith.mulf %186, %187 : vector<2x1x1xf32>
      %c0_84 = arith.constant 0 : index
      %c0_85 = arith.constant 0 : index
      %c0_86 = arith.constant 0 : index
      %189 = vector.load %arg3[%c0_84, %c0_85, %c0_86] : memref<2x8x4xf32, #tpu.memory_space<vmem>>, vector<2x8x4xf32>
      %190 = vector.broadcast %184 : vector<2x1x1xf32> to vector<2x8x4xf32>
      %191 = arith.mulf %190, %189 : vector<2x8x4xf32>
      %192 = vector.broadcast %188 : vector<2x1x1xf32> to vector<2x8x4xf32>
      %193 = arith.mulf %192, %178 : vector<2x8x4xf32>
      %194 = arith.addf %191, %193 : vector<2x8x4xf32>
      %c0_87 = arith.constant 0 : index
      %c0_88 = arith.constant 0 : index
      %c0_89 = arith.constant 0 : index
      %195 = vector.load %arg19[%c0_87, %c0_88, %c0_89] : memref<2x8x4xf32, #tpu.memory_space<vmem>>, vector<2x8x4xf32>
      tpu.vector_store %arg19[%c0_87, %c0_88, %c0_89], %194 {strides = array<i32>} : memref<2x8x4xf32, #tpu.memory_space<vmem>>, vector<2x8x4xf32>,
    } else {
    }
    return
  }
  func.func @transform_0(%arg0: i32, %arg1: i32) -> (i32, i32, i32) {
    %c0_i32 = arith.constant 0 : i32
    %c0_i32_0 = arith.constant 0 : i32
    %c0_i32_1 = arith.constant 0 : i32
    return %arg0, %c0_i32, %c0_i32_0 : i32, i32, i32
  }
  func.func @transform_1(%arg0: i32, %arg1: i32) -> (i32, i32, i32) {
    %c0_i32 = arith.constant 0 : i32
    %c0_i32_0 = arith.constant 0 : i32
    %c0_i32_1 = arith.constant 0 : i32
    return %arg0, %c0_i32, %c0_i32_0 : i32, i32, i32
  }
  func.func @transform_2(%arg0: i32, %arg1: i32) -> (i32, i32) {
    %c0_i32 = arith.constant 0 : i32
    %c0_i32_0 = arith.constant 0 : i32
    %c0_i32_1 = arith.constant 0 : i32
    return %c0_i32, %c0_i32_0 : i32, i32
  }
  func.func @transform_3(%arg0: i32, %arg1: i32) -> (i32, i32, i32) {
    %c0_i32 = arith.constant 0 : i32
    %c0_i32_0 = arith.constant 0 : i32
    %c0_i32_1 = arith.constant 0 : i32
    %c0_i32_2 = arith.constant 0 : i32
    return %c0_i32, %c0_i32_0, %c0_i32_1 : i32, i32, i32
  }
  func.func @transform_4(%arg0: i32, %arg1: i32) -> (i32, i32, i32) {
    %c0_i32 = arith.constant 0 : i32
    %c0_i32_0 = arith.constant 0 : i32
    %c0_i32_1 = arith.constant 0 : i32
    return %arg1, %c0_i32, %c0_i32_0 : i32, i32, i32
  }
  func.func @transform_5(%arg0: i32, %arg1: i32) -> (i32, i32, i32) {
    %c0_i32 = arith.constant 0 : i32
    %c0_i32_0 = arith.constant 0 : i32
    %c0_i32_1 = arith.constant 0 : i32
    return %arg1, %c0_i32, %c0_i32_0 : i32, i32, i32
  }
  func.func @transform_6(%arg0: i32, %arg1: i32) -> (i32, i32, i32) {
    %c0_i32 = arith.constant 0 : i32
    %c0_i32_0 = arith.constant 0 : i32
    %c0_i32_1 = arith.constant 0 : i32
    return %arg1, %c0_i32, %c0_i32_0 : i32, i32, i32
  }
  func.func @transform_7(%arg0: i32, %arg1: i32) -> (i32, i32, i32) {
    %c0_i32 = arith.constant 0 : i32
    %c0_i32_0 = arith.constant 0 : i32
    %c0_i32_1 = arith.constant 0 : i32
    return %arg1, %c0_i32, %c0_i32_0 : i32, i32, i32
  }
  func.func @transform_8(%arg0: i32, %arg1: i32) -> (i32, i32, i32) {
    %c0_i32 = arith.constant 0 : i32
    %c0_i32_0 = arith.constant 0 : i32
    %c0_i32_1 = arith.constant 0 : i32
    return %arg1, %c0_i32, %c0_i32_0 : i32, i32, i32
  }
  func.func @transform_9(%arg0: i32, %arg1: i32) -> (i32, i32, i32) {
    %c0_i32 = arith.constant 0 : i32
    %c0_i32_0 = arith.constant 0 : i32
    %c0_i32_1 = arith.constant 0 : i32
    return %arg1, %c0_i32, %c0_i32_0 : i32, i32, i32
  }
  func.func @transform_10(%arg0: i32, %arg1: i32) -> (i32, i32, i32) {
    %c0_i32 = arith.constant 0 : i32
    %c0_i32_0 = arith.constant 0 : i32
    %c0_i32_1 = arith.constant 0 : i32
    return %arg1, %c0_i32, %c0_i32_0 : i32, i32, i32
  }
  func.func @transform_11(%arg0: i32, %arg1: i32) -> (i32, i32, i32) {
    %c0_i32 = arith.constant 0 : i32
    %c0_i32_0 = arith.constant 0 : i32
    %c0_i32_1 = arith.constant 0 : i32
    return %arg1, %c0_i32, %c0_i32_0 : i32, i32, i32
  }
  func.func @transform_12(%arg0: i32, %arg1: i32) -> (i32, i32, i32) {
    %c0_i32 = arith.constant 0 : i32
    %c0_i32_0 = arith.constant 0 : i32
    %c0_i32_1 = arith.constant 0 : i32
    return %arg1, %c0_i32, %c0_i32_0 : i32, i32, i32
  }
  func.func @transform_13(%arg0: i32, %arg1: i32) -> (i32, i32, i32) {
    %c0_i32 = arith.constant 0 : i32
    %c0_i32_0 = arith.constant 0 : i32
    %c0_i32_1 = arith.constant 0 : i32
    return %arg1, %c0_i32, %c0_i32_0 : i32, i32, i32
  }
  func.func @transform_14(%arg0: i32, %arg1: i32) -> (i32, i32, i32) {
    %c0_i32 = arith.constant 0 : i32
    %c0_i32_0 = arith.constant 0 : i32
    %c0_i32_1 = arith.constant 0 : i32
    return %arg1, %c0_i32, %c0_i32_0 : i32, i32, i32
  }
  func.func @transform_15(%arg0: i32, %arg1: i32) -> (i32, i32, i32) {
    %c0_i32 = arith.constant 0 : i32
    %c0_i32_0 = arith.constant 0 : i32
    %c0_i32_1 = arith.constant 0 : i32
    return %arg1, %c0_i32, %c0_i32_0 : i32, i32, i32
  }
  func.func @transform_16(%arg0: i32, %arg1: i32) -> (i32, i32) {
    %c0_i32 = arith.constant 0 : i32
    %c0_i32_0 = arith.constant 0 : i32
    %c0_i32_1 = arith.constant 0 : i32
    return %c0_i32, %c0_i32_0 : i32, i32
  }
  func.func @transform_17(%arg0: i32, %arg1: i32) -> (i32, i32, i32) {
    %c0_i32 = arith.constant 0 : i32
    %c0_i32_0 = arith.constant 0 : i32
    %c0_i32_1 = arith.constant 0 : i32
    return %arg0, %c0_i32, %c0_i32_0 : i32, i32, i32
  }
}

</mosaic_0001>

<llo_original>
// kernel: tpu_custom_call.1
$region0: #{tpu_custom_call.1}
  #allocation0 [shape = 'u32[]', space=smem, size = 0x4, offset = 0x4, fixed_abs, tag = 'smem constant byte address 0x4 - core index']
  #allocation1 [shape = 'u32[144,128]{1,0:T(1,128)}', space=vmem, size = 0x12000, scoped, tag = 'internal scratch']
  #allocation2 [shape = 'f32[16,32]{1,0:T(8,128)}', space=vmem, size = 0x2000, scoped, tag = 'scratch operand']
  %s0 = inlined_call_operand.vmem [shape: f32[2,1,1], index: 0, kind: input, shape index: {}]
  %s1 = inlined_call_operand.vmem [shape: f32[2,8,4], index: 1, kind: input, shape index: {}]
  %s2 = inlined_call_operand.vmem [shape: bf16[4,32], index: 2, kind: input, shape index: {}]
  %s3 = inlined_call_operand.vmem [shape: f32[1,1,32], index: 3, kind: input, shape index: {}]
  %s4 = inlined_call_operand.vmem [shape: bf16[2,32,96], index: 4, kind: input, shape index: {}]
  %s5 = inlined_call_operand.vmem [shape: f32[2,1,96], index: 5, kind: input, shape index: {}]
  %s6 = inlined_call_operand.vmem [shape: bf16[2,32,32], index: 6, kind: input, shape index: {}]
  %s7 = inlined_call_operand.vmem [shape: f32[2,1,32], index: 7, kind: input, shape index: {}]
  %s8 = inlined_call_operand.vmem [shape: f32[2,1,32], index: 8, kind: input, shape index: {}]
  %s9 = inlined_call_operand.vmem [shape: f32[2,1,32], index: 9, kind: input, shape index: {}]
  %s10 = inlined_call_operand.vmem [shape: bf16[2,32,128], index: 10, kind: input, shape index: {}]
  %s11 = inlined_call_operand.vmem [shape: f32[2,1,128], index: 11, kind: input, shape index: {}]
  %s12 = inlined_call_operand.vmem [shape: bf16[2,128,32], index: 12, kind: input, shape index: {}]
  %s13 = inlined_call_operand.vmem [shape: f32[2,1,32], index: 13, kind: input, shape index: {}]
  %s14 = inlined_call_operand.vmem [shape: f32[2,1,32], index: 14, kind: input, shape index: {}]
  %s15 = inlined_call_operand.vmem [shape: f32[2,1,32], index: 15, kind: input, shape index: {}]
  %s16 = inlined_call_operand.vmem [shape: bf16[32,4], index: 16, kind: input, shape index: {}]
  %s17 = inlined_call_operand.vmem [shape: f32[2,8,4], index: 17, kind: output, shape index: {}]
  %s18 = sld [smem:[#allocation0]]
  $region109: #{tpu_custom_call.1} parent=0
    _
  %s20 = ssub.s32 1, %s18
  %s21 = scalar_select 0, %s20, %s18
  loop: start=0, step=1, limit=4
  $region2: #{tpu_custom_call.1} parent=0 // loop_pre_header
    _
  $region3: #{tpu_custom_call.1} parent=0 // loop_header
    %s23 = sphi 0, %s27
    %p24 = scmp.ge.s32.totalorder %s23, 4
    %s30 = sphi 0, %s42
    %s31 = sphi 0, %s38
    %s32 = sphi 0, %s30
    %s33 = sphi 0, %s31
    %s34 = sphi 0, %s32
    %s35 = sphi 0, %s33
    %s45 = sphi 0, %s47
    %s48 = sphi 0, %s45
    %s49 = sphi 0, %s48
    %s65 = sphi 0, %s49
    %s71 = sphi 0, %s73
    %s74 = sphi 0, %s71
    %s75 = sphi 0, %s74
    %s91 = sphi 0, %s75
    %s95 = sphi 0, %s95
    %s97 = sphi 0, %s95
    %s98 = sphi 0, %s97
    %s112 = sphi 0, %s98
    %s116 = sphi 0, %s116
    %s118 = sphi 0, %s116
    %s119 = sphi 0, %s118
    %s133 = sphi 0, %s119
    %s139 = sphi 0, %s141
    %s142 = sphi 0, %s139
    %s143 = sphi 0, %s142
    %s159 = sphi 0, %s143
    %s165 = sphi 0, %s167
    %s168 = sphi 0, %s165
    %s169 = sphi 0, %s168
    %s185 = sphi 0, %s169
    %s191 = sphi 0, %s193
    %s194 = sphi 0, %s191
    %s195 = sphi 0, %s194
    %s211 = sphi 0, %s195
    %s217 = sphi 0, %s219
    %s220 = sphi 0, %s217
    %s221 = sphi 0, %s220
    %s237 = sphi 0, %s221
    %s243 = sphi 0, %s245
    %s246 = sphi 0, %s243
    %s247 = sphi 0, %s246
    %s263 = sphi 0, %s247
    %s269 = sphi 0, %s271
    %s272 = sphi 0, %s269
    %s273 = sphi 0, %s272
    %s289 = sphi 0, %s273
    %s295 = sphi 0, %s297
    %s298 = sphi 0, %s295
    %s299 = sphi 0, %s298
    %s315 = sphi 0, %s299
    %s321 = sphi 0, %s323
    %s324 = sphi 0, %s321
    %s325 = sphi 0, %s324
    %s341 = sphi 0, %s325
    %s347 = sphi 0, %s349
    %s350 = sphi 0, %s347
    %s351 = sphi 0, %s350
    %s367 = sphi 0, %s351
    %s373 = sphi 0, %s375
    %s376 = sphi 0, %s373
    %s377 = sphi 0, %s376
    %s393 = sphi 0, %s377
    %s399 = sphi 0, %s401
    %s402 = sphi 0, %s399
    %s403 = sphi 0, %s402
    %s419 = sphi 0, %s403
    %s425 = sphi 0, %s427
    %s428 = sphi 0, %s425
    %s429 = sphi 0, %s428
    %s445 = sphi 0, %s429
    %s449 = sphi 0, %s449
    %s451 = sphi 0, %s449
    %s452 = sphi 0, %s451
    %s466 = sphi 0, %s452
    %s472 = sphi 0, %s474
    %s475 = sphi 0, %s472
    %s476 = sphi 0, %s475
    %s492 = sphi 0, %s476
  $region4: #{tpu_custom_call.1} parent=0 // loop_header_branch
    %26 = sbr.rel (%p24) target = $region8
  $region5: #{tpu_custom_call.1} parent=0 // loop_body
    %s28 = ssub.s32 %s23, 1
    %s29 = ssub.s32 %s23, 2
    %s36 = sadd.s32 1, %s31
    %p37 = scmp.ge.s32.totalorder %s36, 2
    %s38 = scalar_select %p37, 0, %s36
    %s39 = sadd.s32 1, %s30
    %s40 = scalar_select %p37, %s39, %s30
    %p41 = scmp.ge.s32.totalorder %s40, 1
    %s42 = scalar_select %p41, 0, %s40
    %s43 = ssub.s32 %s30, %s42
    %p44 = scmp.eq.s32.totalorder %s43, 0
    %s46 = sadd.s32 %s45, 1
    %s47 = scalar_select %p44, %s45, %s46
    %p50 = pneg %p44
    %p51 = scmp.eq.s32.totalorder %s23, 1
    %p52 = por %p50, %p51
    %p53 = scmp.ne.s32.totalorder %s45, %s48
    %p54 = scmp.eq.s32.totalorder %s23, 0
    %p55 = por %p53, %p54
    %p56 = scmp.ne.s32.totalorder %s45, %s48
    %p57 = scmp.eq.s32.totalorder %s28, 1
    %p58 = por %p56, %p57
    %p59 = scmp.ne.s32.totalorder %s48, %s49
    %p60 = scmp.eq.s32.totalorder %s28, 0
    %p61 = por %p59, %p60
    %p62 = scmp.ne.s32.totalorder %s48, %s49
    %p63 = scmp.eq.s32.totalorder %s29, 1
    %p64 = por %p62, %p63
    %p66 = scmp.ne.s32.totalorder %s49, %s65
    %p67 = scmp.eq.s32.totalorder %s29, 0
    %p68 = por %p66, %p67
    %s69 = ssub.s32 %s30, %s42
    %p70 = scmp.eq.s32.totalorder %s69, 0
    %s72 = sadd.s32 %s71, 1
    %s73 = scalar_select %p70, %s71, %s72
    %p76 = pneg %p70
    %p77 = scmp.eq.s32.totalorder %s23, 1
    %p78 = por %p76, %p77
    %p79 = scmp.ne.s32.totalorder %s71, %s74
    %p80 = scmp.eq.s32.totalorder %s23, 0
    %p81 = por %p79, %p80
    %p82 = scmp.ne.s32.totalorder %s71, %s74
    %p83 = scmp.eq.s32.totalorder %s28, 1
    %p84 = por %p82, %p83
    %p85 = scmp.ne.s32.totalorder %s74, %s75
    %p86 = scmp.eq.s32.totalorder %s28, 0
    %p87 = por %p85, %p86
    %p88 = scmp.ne.s32.totalorder %s74, %s75
    %p89 = scmp.eq.s32.totalorder %s29, 1
    %p90 = por %p88, %p89
    %p92 = scmp.ne.s32.totalorder %s75, %s91
    %p93 = scmp.eq.s32.totalorder %s29, 0
    %p94 = por %p92, %p93
    %s96 = sadd.s32 %s95, 1
    %p99 = scmp.eq.s32.totalorder %s23, 1
    %p100 = scmp.ne.s32.totalorder %s95, %s97
    %p101 = scmp.eq.s32.totalorder %s23, 0
    %p102 = por %p100, %p101
    %p103 = scmp.ne.s32.totalorder %s95, %s97
    %p104 = scmp.eq.s32.totalorder %s28, 1
    %p105 = por %p103, %p104
    %p106 = scmp.ne.s32.totalorder %s97, %s98
    %p107 = scmp.eq.s32.totalorder %s28, 0
    %p108 = por %p106, %p107
    %p109 = scmp.ne.s32.totalorder %s97, %s98
    %p110 = scmp.eq.s32.totalorder %s29, 1
    %p111 = por %p109, %p110
    %p113 = scmp.ne.s32.totalorder %s98, %s112
    %p114 = scmp.eq.s32.totalorder %s29, 0
    %p115 = por %p113, %p114
    %s117 = sadd.s32 %s116, 1
    %p120 = scmp.eq.s32.totalorder %s23, 1
    %p121 = scmp.ne.s32.totalorder %s116, %s118
    %p122 = scmp.eq.s32.totalorder %s23, 0
    %p123 = por %p121, %p122
    %p124 = scmp.ne.s32.totalorder %s116, %s118
    %p125 = scmp.eq.s32.totalorder %s28, 1
    %p126 = por %p124, %p125
    %p127 = scmp.ne.s32.totalorder %s118, %s119
    %p128 = scmp.eq.s32.totalorder %s28, 0
    %p129 = por %p127, %p128
    %p130 = scmp.ne.s32.totalorder %s118, %s119
    %p131 = scmp.eq.s32.totalorder %s29, 1
    %p132 = por %p130, %p131
    %p134 = scmp.ne.s32.totalorder %s119, %s133
    %p135 = scmp.eq.s32.totalorder %s29, 0
    %p136 = por %p134, %p135
    %s137 = ssub.s32 %s31, %s38
    %p138 = scmp.eq.s32.totalorder %s137, 0
    %s140 = sadd.s32 %s139, 1
    %s141 = scalar_select %p138, %s139, %s140
    %p144 = pneg %p138
    %p145 = scmp.eq.s32.totalorder %s23, 1
    %p146 = por %p144, %p145
    %p147 = scmp.ne.s32.totalorder %s139, %s142
    %p148 = scmp.eq.s32.totalorder %s23, 0
    %p149 = por %p147, %p148
    %p150 = scmp.ne.s32.totalorder %s139, %s142
    %p151 = scmp.eq.s32.totalorder %s28, 1
    %p152 = por %p150, %p151
    %p153 = scmp.ne.s32.totalorder %s142, %s143
    %p154 = scmp.eq.s32.totalorder %s28, 0
    %p155 = por %p153, %p154
    %p156 = scmp.ne.s32.totalorder %s142, %s143
    %p157 = scmp.eq.s32.totalorder %s29, 1
    %p158 = por %p156, %p157
    %p160 = scmp.ne.s32.totalorder %s143, %s159
    %p161 = scmp.eq.s32.totalorder %s29, 0
    %p162 = por %p160, %p161
    %s163 = ssub.s32 %s31, %s38
    %p164 = scmp.eq.s32.totalorder %s163, 0
    %s166 = sadd.s32 %s165, 1
    %s167 = scalar_select %p164, %s165, %s166
    %p170 = pneg %p164
    %p171 = scmp.eq.s32.totalorder %s23, 1
    %p172 = por %p170, %p171
    %p173 = scmp.ne.s32.totalorder %s165, %s168
    %p174 = scmp.eq.s32.totalorder %s23, 0
    %p175 = por %p173, %p174
    %p176 = scmp.ne.s32.totalorder %s165, %s168
    %p177 = scmp.eq.s32.totalorder %s28, 1
    %p178 = por %p176, %p177
    %p179 = scmp.ne.s32.totalorder %s168, %s169
    %p180 = scmp.eq.s32.totalorder %s28, 0
    %p181 = por %p179, %p180
    %p182 = scmp.ne.s32.totalorder %s168, %s169
    %p183 = scmp.eq.s32.totalorder %s29, 1
    %p184 = por %p182, %p183
    %p186 = scmp.ne.s32.totalorder %s169, %s185
    %p187 = scmp.eq.s32.totalorder %s29, 0
    %p188 = por %p186, %p187
    %s189 = ssub.s32 %s31, %s38
    %p190 = scmp.eq.s32.totalorder %s189, 0
    %s192 = sadd.s32 %s191, 1
    %s193 = scalar_select %p190, %s191, %s192
    %p196 = pneg %p190
    %p197 = scmp.eq.s32.totalorder %s23, 1
    %p198 = por %p196, %p197
    %p199 = scmp.ne.s32.totalorder %s191, %s194
    %p200 = scmp.eq.s32.totalorder %s23, 0
    %p201 = por %p199, %p200
    %p202 = scmp.ne.s32.totalorder %s191, %s194
    %p203 = scmp.eq.s32.totalorder %s28, 1
    %p204 = por %p202, %p203
    %p205 = scmp.ne.s32.totalorder %s194, %s195
    %p206 = scmp.eq.s32.totalorder %s28, 0
    %p207 = por %p205, %p206
    %p208 = scmp.ne.s32.totalorder %s194, %s195
    %p209 = scmp.eq.s32.totalorder %s29, 1
    %p210 = por %p208, %p209
    %p212 = scmp.ne.s32.totalorder %s195, %s211
    %p213 = scmp.eq.s32.totalorder %s29, 0
    %p214 = por %p212, %p213
    %s215 = ssub.s32 %s31, %s38
    %p216 = scmp.eq.s32.totalorder %s215, 0
    %s218 = sadd.s32 %s217, 1
    %s219 = scalar_select %p216, %s217, %s218
    %p222 = pneg %p216
    %p223 = scmp.eq.s32.totalorder %s23, 1
    %p224 = por %p222, %p223
    %p225 = scmp.ne.s32.totalorder %s217, %s220
    %p226 = scmp.eq.s32.totalorder %s23, 0
    %p227 = por %p225, %p226
    %p228 = scmp.ne.s32.totalorder %s217, %s220
    %p229 = scmp.eq.s32.totalorder %s28, 1
    %p230 = por %p228, %p229
    %p231 = scmp.ne.s32.totalorder %s220, %s221
    %p232 = scmp.eq.s32.totalorder %s28, 0
    %p233 = por %p231, %p232
    %p234 = scmp.ne.s32.totalorder %s220, %s221
    %p235 = scmp.eq.s32.totalorder %s29, 1
    %p236 = por %p234, %p235
    %p238 = scmp.ne.s32.totalorder %s221, %s237
    %p239 = scmp.eq.s32.totalorder %s29, 0
    %p240 = por %p238, %p239
    %s241 = ssub.s32 %s31, %s38
    %p242 = scmp.eq.s32.totalorder %s241, 0
    %s244 = sadd.s32 %s243, 1
    %s245 = scalar_select %p242, %s243, %s244
    %p248 = pneg %p242
    %p249 = scmp.eq.s32.totalorder %s23, 1
    %p250 = por %p248, %p249
    %p251 = scmp.ne.s32.totalorder %s243, %s246
    %p252 = scmp.eq.s32.totalorder %s23, 0
    %p253 = por %p251, %p252
    %p254 = scmp.ne.s32.totalorder %s243, %s246
    %p255 = scmp.eq.s32.totalorder %s28, 1
    %p256 = por %p254, %p255
    %p257 = scmp.ne.s32.totalorder %s246, %s247
    %p258 = scmp.eq.s32.totalorder %s28, 0
    %p259 = por %p257, %p258
    %p260 = scmp.ne.s32.totalorder %s246, %s247
    %p261 = scmp.eq.s32.totalorder %s29, 1
    %p262 = por %p260, %p261
    %p264 = scmp.ne.s32.totalorder %s247, %s263
    %p265 = scmp.eq.s32.totalorder %s29, 0
    %p266 = por %p264, %p265
    %s267 = ssub.s32 %s31, %s38
    %p268 = scmp.eq.s32.totalorder %s267, 0
    %s270 = sadd.s32 %s269, 1
    %s271 = scalar_select %p268, %s269, %s270
    %p274 = pneg %p268
    %p275 = scmp.eq.s32.totalorder %s23, 1
    %p276 = por %p274, %p275
    %p277 = scmp.ne.s32.totalorder %s269, %s272
    %p278 = scmp.eq.s32.totalorder %s23, 0
    %p279 = por %p277, %p278
    %p280 = scmp.ne.s32.totalorder %s269, %s272
    %p281 = scmp.eq.s32.totalorder %s28, 1
    %p282 = por %p280, %p281
    %p283 = scmp.ne.s32.totalorder %s272, %s273
    %p284 = scmp.eq.s32.totalorder %s28, 0
    %p285 = por %p283, %p284
    %p286 = scmp.ne.s32.totalorder %s272, %s273
    %p287 = scmp.eq.s32.totalorder %s29, 1
    %p288 = por %p286, %p287
    %p290 = scmp.ne.s32.totalorder %s273, %s289
    %p291 = scmp.eq.s32.totalorder %s29, 0
    %p292 = por %p290, %p291
    %s293 = ssub.s32 %s31, %s38
    %p294 = scmp.eq.s32.totalorder %s293, 0
    %s296 = sadd.s32 %s295, 1
    %s297 = scalar_select %p294, %s295, %s296
    %p300 = pneg %p294
    %p301 = scmp.eq.s32.totalorder %s23, 1
    %p302 = por %p300, %p301
    %p303 = scmp.ne.s32.totalorder %s295, %s298
    %p304 = scmp.eq.s32.totalorder %s23, 0
    %p305 = por %p303, %p304
    %p306 = scmp.ne.s32.totalorder %s295, %s298
    %p307 = scmp.eq.s32.totalorder %s28, 1
    %p308 = por %p306, %p307
    %p309 = scmp.ne.s32.totalorder %s298, %s299
    %p310 = scmp.eq.s32.totalorder %s28, 0
    %p311 = por %p309, %p310
    %p312 = scmp.ne.s32.totalorder %s298, %s299
    %p313 = scmp.eq.s32.totalorder %s29, 1
    %p314 = por %p312, %p313
    %p316 = scmp.ne.s32.totalorder %s299, %s315
    %p317 = scmp.eq.s32.totalorder %s29, 0
    %p318 = por %p316, %p317
    %s319 = ssub.s32 %s31, %s38
    %p320 = scmp.eq.s32.totalorder %s319, 0
    %s322 = sadd.s32 %s321, 1
    %s323 = scalar_select %p320, %s321, %s322
    %p326 = pneg %p320
    %p327 = scmp.eq.s32.totalorder %s23, 1
    %p328 = por %p326, %p327
    %p329 = scmp.ne.s32.totalorder %s321, %s324
    %p330 = scmp.eq.s32.totalorder %s23, 0
    %p331 = por %p329, %p330
    %p332 = scmp.ne.s32.totalorder %s321, %s324
    %p333 = scmp.eq.s32.totalorder %s28, 1
    %p334 = por %p332, %p333
    %p335 = scmp.ne.s32.totalorder %s324, %s325
    %p336 = scmp.eq.s32.totalorder %s28, 0
    %p337 = por %p335, %p336
    %p338 = scmp.ne.s32.totalorder %s324, %s325
    %p339 = scmp.eq.s32.totalorder %s29, 1
    %p340 = por %p338, %p339
    %p342 = scmp.ne.s32.totalorder %s325, %s341
    %p343 = scmp.eq.s32.totalorder %s29, 0
    %p344 = por %p342, %p343
    %s345 = ssub.s32 %s31, %s38
    %p346 = scmp.eq.s32.totalorder %s345, 0
    %s348 = sadd.s32 %s347, 1
    %s349 = scalar_select %p346, %s347, %s348
    %p352 = pneg %p346
    %p353 = scmp.eq.s32.totalorder %s23, 1
    %p354 = por %p352, %p353
    %p355 = scmp.ne.s32.totalorder %s347, %s350
    %p356 = scmp.eq.s32.totalorder %s23, 0
    %p357 = por %p355, %p356
    %p358 = scmp.ne.s32.totalorder %s347, %s350
    %p359 = scmp.eq.s32.totalorder %s28, 1
    %p360 = por %p358, %p359
    %p361 = scmp.ne.s32.totalorder %s350, %s351
    %p362 = scmp.eq.s32.totalorder %s28, 0
    %p363 = por %p361, %p362
    %p364 = scmp.ne.s32.totalorder %s350, %s351
    %p365 = scmp.eq.s32.totalorder %s29, 1
    %p366 = por %p364, %p365
    %p368 = scmp.ne.s32.totalorder %s351, %s367
    %p369 = scmp.eq.s32.totalorder %s29, 0
    %p370 = por %p368, %p369
    %s371 = ssub.s32 %s31, %s38
    %p372 = scmp.eq.s32.totalorder %s371, 0
    %s374 = sadd.s32 %s373, 1
    %s375 = scalar_select %p372, %s373, %s374
    %p378 = pneg %p372
    %p379 = scmp.eq.s32.totalorder %s23, 1
    %p380 = por %p378, %p379
    %p381 = scmp.ne.s32.totalorder %s373, %s376
    %p382 = scmp.eq.s32.totalorder %s23, 0
    %p383 = por %p381, %p382
    %p384 = scmp.ne.s32.totalorder %s373, %s376
    %p385 = scmp.eq.s32.totalorder %s28, 1
    %p386 = por %p384, %p385
    %p387 = scmp.ne.s32.totalorder %s376, %s377
    %p388 = scmp.eq.s32.totalorder %s28, 0
    %p389 = por %p387, %p388
    %p390 = scmp.ne.s32.totalorder %s376, %s377
    %p391 = scmp.eq.s32.totalorder %s29, 1
    %p392 = por %p390, %p391
    %p394 = scmp.ne.s32.totalorder %s377, %s393
    %p395 = scmp.eq.s32.totalorder %s29, 0
    %p396 = por %p394, %p395
    %s397 = ssub.s32 %s31, %s38
    %p398 = scmp.eq.s32.totalorder %s397, 0
    %s400 = sadd.s32 %s399, 1
    %s401 = scalar_select %p398, %s399, %s400
    %p404 = pneg %p398
    %p405 = scmp.eq.s32.totalorder %s23, 1
    %p406 = por %p404, %p405
    %p407 = scmp.ne.s32.totalorder %s399, %s402
    %p408 = scmp.eq.s32.totalorder %s23, 0
    %p409 = por %p407, %p408
    %p410 = scmp.ne.s32.totalorder %s399, %s402
    %p411 = scmp.eq.s32.totalorder %s28, 1
    %p412 = por %p410, %p411
    %p413 = scmp.ne.s32.totalorder %s402, %s403
    %p414 = scmp.eq.s32.totalorder %s28, 0
    %p415 = por %p413, %p414
    %p416 = scmp.ne.s32.totalorder %s402, %s403
    %p417 = scmp.eq.s32.totalorder %s29, 1
    %p418 = por %p416, %p417
    %p420 = scmp.ne.s32.totalorder %s403, %s419
    %p421 = scmp.eq.s32.totalorder %s29, 0
    %p422 = por %p420, %p421
    %s423 = ssub.s32 %s31, %s38
    %p424 = scmp.eq.s32.totalorder %s423, 0
    %s426 = sadd.s32 %s425, 1
    %s427 = scalar_select %p424, %s425, %s426
    %p430 = pneg %p424
    %p431 = scmp.eq.s32.totalorder %s23, 1
    %p432 = por %p430, %p431
    %p433 = scmp.ne.s32.totalorder %s425, %s428
    %p434 = scmp.eq.s32.totalorder %s23, 0
    %p435 = por %p433, %p434
    %p436 = scmp.ne.s32.totalorder %s425, %s428
    %p437 = scmp.eq.s32.totalorder %s28, 1
    %p438 = por %p436, %p437
    %p439 = scmp.ne.s32.totalorder %s428, %s429
    %p440 = scmp.eq.s32.totalorder %s28, 0
    %p441 = por %p439, %p440
    %p442 = scmp.ne.s32.totalorder %s428, %s429
    %p443 = scmp.eq.s32.totalorder %s29, 1
    %p444 = por %p442, %p443
    %p446 = scmp.ne.s32.totalorder %s429, %s445
    %p447 = scmp.eq.s32.totalorder %s29, 0
    %p448 = por %p446, %p447
    %s450 = sadd.s32 %s449, 1
    %p453 = scmp.eq.s32.totalorder %s23, 1
    %p454 = scmp.ne.s32.totalorder %s449, %s451
    %p455 = scmp.eq.s32.totalorder %s23, 0
    %p456 = por %p454, %p455
    %p457 = scmp.ne.s32.totalorder %s449, %s451
    %p458 = scmp.eq.s32.totalorder %s28, 1
    %p459 = por %p457, %p458
    %p460 = scmp.ne.s32.totalorder %s451, %s452
    %p461 = scmp.eq.s32.totalorder %s28, 0
    %p462 = por %p460, %p461
    %p463 = scmp.ne.s32.totalorder %s451, %s452
    %p464 = scmp.eq.s32.totalorder %s29, 1
    %p465 = por %p463, %p464
    %p467 = scmp.ne.s32.totalorder %s452, %s466
    %p468 = scmp.eq.s32.totalorder %s29, 0
    %p469 = por %p467, %p468
    %s470 = ssub.s32 %s30, %s42
    %p471 = scmp.eq.s32.totalorder %s470, 0
    %s473 = sadd.s32 %s472, 1
    %s474 = scalar_select %p471, %s472, %s473
    %p477 = pneg %p471
    %p478 = scmp.eq.s32.totalorder %s23, 1
    %p479 = por %p477, %p478
    %p480 = scmp.ne.s32.totalorder %s472, %s475
    %p481 = scmp.eq.s32.totalorder %s23, 0
    %p482 = por %p480, %p481
    %p483 = scmp.ne.s32.totalorder %s472, %s475
    %p484 = scmp.eq.s32.totalorder %s28, 1
    %p485 = por %p483, %p484
    %p486 = scmp.ne.s32.totalorder %s475, %s476
    %p487 = scmp.eq.s32.totalorder %s28, 0
    %p488 = por %p486, %p487
    %p489 = scmp.ne.s32.totalorder %s475, %s476
    %p490 = scmp.eq.s32.totalorder %s29, 1
    %p491 = por %p489, %p490
    %p493 = scmp.ne.s32.totalorder %s476, %s492
    %p494 = scmp.eq.s32.totalorder %s29, 0
    %p495 = por %p493, %p494
    %p496 = scmp.le.s32.totalorder 1, %s23
    %p497 = scmp.lt.s32.totalorder %s23, 3
    %p498 = pnand %p496, %p497
    %p499 = pneg %p498
    // Predicated region
    $region9: #{tpu_custom_call.1} parent=5 // pred_check
      _
    $region10: #{tpu_custom_call.1} parent=5 // pred_check_branch
      %501 = sbr.rel (%p498) target = $region12
    $region11: #{tpu_custom_call.1} parent=5 // pred_region
      %s502 = ssub.s32 %s23, 1
      // Predicated region
      $region13: #{tpu_custom_call.1} parent=11 // pred_check
        %p503 = pneg %p61
      $region14: #{tpu_custom_call.1} parent=11 // pred_check_branch
        %505 = sbr.rel (%p503) target = $region16
      $region15: #{tpu_custom_call.1} parent=11 // pred_region
        %s506 = smul.u32 2, %s32
        %p507 = scmp.lt.s32.totalorder %s506, 1
        %s508 = scalar_select %p507, %s506, 1
        %s509 = scalar_lea.vmem %s0, %s508
        %s510 = smul.u32 2, %s32
      $region16: #{tpu_custom_call.1} parent=11 // pred_fallthru
        _
      // Predicated region
      $region17: #{tpu_custom_call.1} parent=11 // pred_check
        %p511 = pneg %p87
      $region18: #{tpu_custom_call.1} parent=11 // pred_check_branch
        %513 = sbr.rel (%p511) target = $region20
      $region19: #{tpu_custom_call.1} parent=11 // pred_region
        %s514 = smul.u32 2, %s32
        %p515 = scmp.lt.s32.totalorder %s514, 1
        %s516 = scalar_select %p515, %s514, 1
        %s517 = smul.addr %s516, 8
        %s518 = scalar_lea.vmem %s1, %s517
        %s519 = smul.u32 2, %s32
      $region20: #{tpu_custom_call.1} parent=11 // pred_fallthru
        _
      // Predicated region
      $region21: #{tpu_custom_call.1} parent=11 // pred_check
        %p520 = pneg %p108
      $region22: #{tpu_custom_call.1} parent=11 // pred_check_branch
        %522 = sbr.rel (%p520) target = $region24
      $region23: #{tpu_custom_call.1} parent=11 // pred_region
        _
      $region24: #{tpu_custom_call.1} parent=11 // pred_fallthru
        _
      // Predicated region
      $region25: #{tpu_custom_call.1} parent=11 // pred_check
        %p523 = pneg %p129
      $region26: #{tpu_custom_call.1} parent=11 // pred_check_branch
        %525 = sbr.rel (%p523) target = $region28
      $region27: #{tpu_custom_call.1} parent=11 // pred_region
        _
      $region28: #{tpu_custom_call.1} parent=11 // pred_fallthru
        _
      // Predicated region
      $region29: #{tpu_custom_call.1} parent=11 // pred_check
        %p526 = pneg %p462
      $region30: #{tpu_custom_call.1} parent=11 // pred_check_branch
        %528 = sbr.rel (%p526) target = $region32
      $region31: #{tpu_custom_call.1} parent=11 // pred_region
        _
      $region32: #{tpu_custom_call.1} parent=11 // pred_fallthru
        _
    $region12: #{tpu_custom_call.1} parent=5 // pred_fallthru
      _
    %p529 = scmp.lt.s32.totalorder %s23, 2
    // Predicated region
    $region33: #{tpu_custom_call.1} parent=5 // pred_check
      %p530 = pneg %p529
    $region34: #{tpu_custom_call.1} parent=5 // pred_check_branch
      %532 = sbr.rel (%p530) target = $region36
    $region35: #{tpu_custom_call.1} parent=5 // pred_region
      // Predicated region
      $region37: #{tpu_custom_call.1} parent=35 // pred_check
        %p533 = pneg %p149
      $region38: #{tpu_custom_call.1} parent=35 // pred_check_branch
        %535 = sbr.rel (%p533) target = $region40
      $region39: #{tpu_custom_call.1} parent=35 // pred_region
        %p536 = scmp.lt.s32.totalorder %s31, 1
        %s537 = scalar_select %p536, %s31, 1
        %s538 = smul.addr %s537, 4
        %s539 = smul.addr %s538, 4
        %s540 = scalar_lea.vmem %s4, %s539
      $region40: #{tpu_custom_call.1} parent=35 // pred_fallthru
        _
      // Predicated region
      $region41: #{tpu_custom_call.1} parent=35 // pred_check
        %p541 = pneg %p175
      $region42: #{tpu_custom_call.1} parent=35 // pred_check_branch
        %543 = sbr.rel (%p541) target = $region44
      $region43: #{tpu_custom_call.1} parent=35 // pred_region
        %p544 = scmp.lt.s32.totalorder %s31, 1
        %s545 = scalar_select %p544, %s31, 1
        %s546 = scalar_lea.vmem %s5, %s545
      $region44: #{tpu_custom_call.1} parent=35 // pred_fallthru
        _
      // Predicated region
      $region45: #{tpu_custom_call.1} parent=35 // pred_check
        %p547 = pneg %p201
      $region46: #{tpu_custom_call.1} parent=35 // pred_check_branch
        %549 = sbr.rel (%p547) target = $region48
      $region47: #{tpu_custom_call.1} parent=35 // pred_region
        %p550 = scmp.lt.s32.totalorder %s31, 1
        %s551 = scalar_select %p550, %s31, 1
        %s552 = smul.addr %s551, 4
        %s553 = smul.addr %s552, 4
        %s554 = scalar_lea.vmem %s6, %s553
      $region48: #{tpu_custom_call.1} parent=35 // pred_fallthru
        _
      // Predicated region
      $region49: #{tpu_custom_call.1} parent=35 // pred_check
        %p555 = pneg %p227
      $region50: #{tpu_custom_call.1} parent=35 // pred_check_branch
        %557 = sbr.rel (%p555) target = $region52
      $region51: #{tpu_custom_call.1} parent=35 // pred_region
        %p558 = scmp.lt.s32.totalorder %s31, 1
        %s559 = scalar_select %p558, %s31, 1
        %s560 = scalar_lea.vmem %s7, %s559
      $region52: #{tpu_custom_call.1} parent=35 // pred_fallthru
        _
      // Predicated region
      $region53: #{tpu_custom_call.1} parent=35 // pred_check
        %p561 = pneg %p253
      $region54: #{tpu_custom_call.1} parent=35 // pred_check_branch
        %563 = sbr.rel (%p561) target = $region56
      $region55: #{tpu_custom_call.1} parent=35 // pred_region
        %p564 = scmp.lt.s32.totalorder %s31, 1
        %s565 = scalar_select %p564, %s31, 1
        %s566 = scalar_lea.vmem %s8, %s565
      $region56: #{tpu_custom_call.1} parent=35 // pred_fallthru
        _
      // Predicated region
      $region57: #{tpu_custom_call.1} parent=35 // pred_check
        %p567 = pneg %p279
      $region58: #{tpu_custom_call.1} parent=35 // pred_check_branch
        %569 = sbr.rel (%p567) target = $region60
      $region59: #{tpu_custom_call.1} parent=35 // pred_region
        %p570 = scmp.lt.s32.totalorder %s31, 1
        %s571 = scalar_select %p570, %s31, 1
        %s572 = scalar_lea.vmem %s9, %s571
      $region60: #{tpu_custom_call.1} parent=35 // pred_fallthru
        _
      // Predicated region
      $region61: #{tpu_custom_call.1} parent=35 // pred_check
        %p573 = pneg %p305
      $region62: #{tpu_custom_call.1} parent=35 // pred_check_branch
        %575 = sbr.rel (%p573) target = $region64
      $region63: #{tpu_custom_call.1} parent=35 // pred_region
        %p576 = scmp.lt.s32.totalorder %s31, 1
        %s577 = scalar_select %p576, %s31, 1
        %s578 = smul.addr %s577, 4
        %s579 = smul.addr %s578, 4
        %s580 = scalar_lea.vmem %s10, %s579
      $region64: #{tpu_custom_call.1} parent=35 // pred_fallthru
        _
      // Predicated region
      $region65: #{tpu_custom_call.1} parent=35 // pred_check
        %p581 = pneg %p331
      $region66: #{tpu_custom_call.1} parent=35 // pred_check_branch
        %583 = sbr.rel (%p581) target = $region68
      $region67: #{tpu_custom_call.1} parent=35 // pred_region
        %p584 = scmp.lt.s32.totalorder %s31, 1
        %s585 = scalar_select %p584, %s31, 1
        %s586 = scalar_lea.vmem %s11, %s585
      $region68: #{tpu_custom_call.1} parent=35 // pred_fallthru
        _
      // Predicated region
      $region69: #{tpu_custom_call.1} parent=35 // pred_check
        %p587 = pneg %p357
      $region70: #{tpu_custom_call.1} parent=35 // pred_check_branch
        %589 = sbr.rel (%p587) target = $region72
      $region71: #{tpu_custom_call.1} parent=35 // pred_region
        %p590 = scmp.lt.s32.totalorder %s31, 1
        %s591 = scalar_select %p590, %s31, 1
        %s592 = smul.addr %s591, 16
        %s593 = smul.addr %s592, 4
        %s594 = scalar_lea.vmem %s12, %s593
      $region72: #{tpu_custom_call.1} parent=35 // pred_fallthru
        _
      // Predicated region
      $region73: #{tpu_custom_call.1} parent=35 // pred_check
        %p595 = pneg %p383
      $region74: #{tpu_custom_call.1} parent=35 // pred_check_branch
        %597 = sbr.rel (%p595) target = $region76
      $region75: #{tpu_custom_call.1} parent=35 // pred_region
        %p598 = scmp.lt.s32.totalorder %s31, 1
        %s599 = scalar_select %p598, %s31, 1
        %s600 = scalar_lea.vmem %s13, %s599
      $region76: #{tpu_custom_call.1} parent=35 // pred_fallthru
        _
      // Predicated region
      $region77: #{tpu_custom_call.1} parent=35 // pred_check
        %p601 = pneg %p409
      $region78: #{tpu_custom_call.1} parent=35 // pred_check_branch
        %603 = sbr.rel (%p601) target = $region80
      $region79: #{tpu_custom_call.1} parent=35 // pred_region
        %p604 = scmp.lt.s32.totalorder %s31, 1
        %s605 = scalar_select %p604, %s31, 1
        %s606 = scalar_lea.vmem %s14, %s605
      $region80: #{tpu_custom_call.1} parent=35 // pred_fallthru
        _
      // Predicated region
      $region81: #{tpu_custom_call.1} parent=35 // pred_check
        %p607 = pneg %p435
      $region82: #{tpu_custom_call.1} parent=35 // pred_check_branch
        %609 = sbr.rel (%p607) target = $region84
      $region83: #{tpu_custom_call.1} parent=35 // pred_region
        %p610 = scmp.lt.s32.totalorder %s31, 1
        %s611 = scalar_select %p610, %s31, 1
        %s612 = scalar_lea.vmem %s15, %s611
      $region84: #{tpu_custom_call.1} parent=35 // pred_fallthru
        _
    $region36: #{tpu_custom_call.1} parent=5 // pred_fallthru
      _
    %p613 = scmp.le.s32.totalorder 1, %s23
    %p614 = scmp.lt.s32.totalorder %s23, 3
    %p615 = pnand %p613, %p614
    %p616 = pneg %p615
    // Predicated region
    $region85: #{tpu_custom_call.1} parent=5 // pred_check
      _
    $region86: #{tpu_custom_call.1} parent=5 // pred_check_branch
      %618 = sbr.rel (%p615) target = $region88
    $region87: #{tpu_custom_call.1} parent=5 // pred_region
      %s619 = ssub.s32 %s23, 1
      %s620 = smul.u32 2, %s32
      %p621 = scmp.lt.s32.totalorder %s620, 1
      %s622 = scalar_select %p621, %s620, 1
      %s623 = scalar_lea.vmem %s0, %s622
      %p624 = pneg %p61
      %p625 = pneg %p58
      %s626 = smul.u32 2, %s32
      %p627 = scmp.lt.s32.totalorder %s626, 1
      %s628 = scalar_select %p627, %s626, 1
      %s629 = smul.addr %s628, 8
      %s630 = scalar_lea.vmem %s1, %s629
      %p631 = pneg %p87
      %p632 = pneg %p84
      %p633 = pneg %p108
      %p634 = pneg %p105
      %p635 = pneg %p129
      %p636 = pneg %p126
      %p637 = scmp.lt.s32.totalorder %s33, 1
      %s638 = scalar_select %p637, %s33, 1
      %s639 = smul.addr %s638, 4
      %s640 = smul.addr %s639, 4
      %s641 = scalar_lea.vmem %s4, %s640
      %p642 = pneg %p155
      %p643 = pneg %p152
      %p644 = scmp.lt.s32.totalorder %s33, 1
      %s645 = scalar_select %p644, %s33, 1
      %s646 = scalar_lea.vmem %s5, %s645
      %p647 = pneg %p181
      %p648 = pneg %p178
      %p649 = scmp.lt.s32.totalorder %s33, 1
      %s650 = scalar_select %p649, %s33, 1
      %s651 = smul.addr %s650, 4
      %s652 = smul.addr %s651, 4
      %s653 = scalar_lea.vmem %s6, %s652
      %p654 = pneg %p207
      %p655 = pneg %p204
      %p656 = scmp.lt.s32.totalorder %s33, 1
      %s657 = scalar_select %p656, %s33, 1
      %s658 = scalar_lea.vmem %s7, %s657
      %p659 = pneg %p233
      %p660 = pneg %p230
      %p661 = scmp.lt.s32.totalorder %s33, 1
      %s662 = scalar_select %p661, %s33, 1
      %s663 = scalar_lea.vmem %s8, %s662
      %p664 = pneg %p259
      %p665 = pneg %p256
      %p666 = scmp.lt.s32.totalorder %s33, 1
      %s667 = scalar_select %p666, %s33, 1
      %s668 = scalar_lea.vmem %s9, %s667
      %p669 = pneg %p285
      %p670 = pneg %p282
      %p671 = scmp.lt.s32.totalorder %s33, 1
      %s672 = scalar_select %p671, %s33, 1
      %s673 = smul.addr %s672, 4
      %s674 = smul.addr %s673, 4
      %s675 = scalar_lea.vmem %s10, %s674
      %p676 = pneg %p311
      %p677 = pneg %p308
      %p678 = scmp.lt.s32.totalorder %s33, 1
      %s679 = scalar_select %p678, %s33, 1
      %s680 = scalar_lea.vmem %s11, %s679
      %p681 = pneg %p337
      %p682 = pneg %p334
      %p683 = scmp.lt.s32.totalorder %s33, 1
      %s684 = scalar_select %p683, %s33, 1
      %s685 = smul.addr %s684, 16
      %s686 = smul.addr %s685, 4
      %s687 = scalar_lea.vmem %s12, %s686
      %p688 = pneg %p363
      %p689 = pneg %p360
      %p690 = scmp.lt.s32.totalorder %s33, 1
      %s691 = scalar_select %p690, %s33, 1
      %s692 = scalar_lea.vmem %s13, %s691
      %p693 = pneg %p389
      %p694 = pneg %p386
      %p695 = scmp.lt.s32.totalorder %s33, 1
      %s696 = scalar_select %p695, %s33, 1
      %s697 = scalar_lea.vmem %s14, %s696
      %p698 = pneg %p415
      %p699 = pneg %p412
      %p700 = scmp.lt.s32.totalorder %s33, 1
      %s701 = scalar_select %p700, %s33, 1
      %s702 = scalar_lea.vmem %s15, %s701
      %p703 = pneg %p441
      %p704 = pneg %p438
      %p705 = pneg %p462
      %p706 = pneg %p459
      %p707 = pneg %p488
      %p708 = pneg %p485
      %s709 = smul.u32 2, %s32
      %p710 = scmp.lt.s32.totalorder %s709, 1
      %s711 = scalar_select %p710, %s709, 1
      %s712 = smul.addr %s711, 8
      %s713 = scalar_lea.vmem %s17, %s712
      %s714 = smul.u32 2, %s32
      %p715 = scmp.lt.s32.totalorder %s714, 1
      %s716 = scalar_select %p715, %s714, 1
      %s717 = scalar_lea.vmem %s0, %s716
      %s718 = smul.u32 2, %s32
      %s719 = smul.u32 2, %s32
      %p720 = scmp.lt.s32.totalorder %s719, 1
      %s721 = scalar_select %p720, %s719, 1
      %s722 = smul.addr %s721, 8
      %s723 = scalar_lea.vmem %s1, %s722
      %s724 = smul.u32 2, %s32
      %p725 = scmp.lt.s32.totalorder %s33, 1
      %s726 = scalar_select %p725, %s33, 1
      %s727 = smul.addr %s726, 4
      %s728 = smul.addr %s727, 4
      %s729 = scalar_lea.vmem %s4, %s728
      %p730 = scmp.lt.s32.totalorder %s33, 1
      %s731 = scalar_select %p730, %s33, 1
      %s732 = scalar_lea.vmem %s5, %s731
      %p733 = scmp.lt.s32.totalorder %s33, 1
      %s734 = scalar_select %p733, %s33, 1
      %s735 = smul.addr %s734, 4
      %s736 = smul.addr %s735, 4
      %s737 = scalar_lea.vmem %s6, %s736
      %p738 = scmp.lt.s32.totalorder %s33, 1
      %s739 = scalar_select %p738, %s33, 1
      %s740 = scalar_lea.vmem %s7, %s739
      %p741 = scmp.lt.s32.totalorder %s33, 1
      %s742 = scalar_select %p741, %s33, 1
      %s743 = scalar_lea.vmem %s8, %s742
      %p744 = scmp.lt.s32.totalorder %s33, 1
      %s745 = scalar_select %p744, %s33, 1
      %s746 = scalar_lea.vmem %s9, %s745
      %p747 = scmp.lt.s32.totalorder %s33, 1
      %s748 = scalar_select %p747, %s33, 1
      %s749 = smul.addr %s748, 4
      %s750 = smul.addr %s749, 4
      %s751 = scalar_lea.vmem %s10, %s750
      %p752 = scmp.lt.s32.totalorder %s33, 1
      %s753 = scalar_select %p752, %s33, 1
      %s754 = scalar_lea.vmem %s11, %s753
      %p755 = scmp.lt.s32.totalorder %s33, 1
      %s756 = scalar_select %p755, %s33, 1
      %s757 = smul.addr %s756, 16
      %s758 = smul.addr %s757, 4
      %s759 = scalar_lea.vmem %s12, %s758
      %p760 = scmp.lt.s32.totalorder %s33, 1
      %s761 = scalar_select %p760, %s33, 1
      %s762 = scalar_lea.vmem %s13, %s761
      %p763 = scmp.lt.s32.totalorder %s33, 1
      %s764 = scalar_select %p763, %s33, 1
      %s765 = scalar_lea.vmem %s14, %s764
      %p766 = scmp.lt.s32.totalorder %s33, 1
      %s767 = scalar_select %p766, %s33, 1
      %s768 = scalar_lea.vmem %s15, %s767
      %s769 = smul.u32 2, %s32
      %p770 = scmp.lt.s32.totalorder %s769, 1
      %s771 = scalar_select %p770, %s769, 1
      %s772 = smul.addr %s771, 8
      %s773 = scalar_lea.vmem %s17, %s772
      %s774 = smul.u32 2, %s32
      %p776 = scmp.eq.s32.totalorder %s33, 0
      // Predicated region
      $region89: #{tpu_custom_call.1} parent=87 // pred_check
        %p777 = pneg %p776
      $region90: #{tpu_custom_call.1} parent=87 // pred_check_branch
        %779 = sbr.rel (%p777) target = $region92
      $region91: #{tpu_custom_call.1} parent=87 // pred_region
        %v780 = vld [vmem:[%s717] sm:$0x1]
        %v781 = vld [vmem:[%s717 + $0x1] sm:$0x1]
        %v782 = vmul.f32 %v780, %v780
        %v783 = vmul.f32 %v781, %v781
        %v784 = vadd.f32 %v782, 0.25
        %v785 = vadd.f32 %v783, 0.25
        %v786 = vrsqrt.pop %v784
        %v787 = vrsqrt.pop %v785
        %v788 = vlog2.pop %v780
        %v789 = vmul.f32 %v788, 0.6931472
        %v790 = vlog2.pop %v781
        %v791 = vmul.f32 %v790, 0.6931472
        %v792 = vmul.f32 %v789, 0.25
        %v793 = vmul.f32 %v791, 0.25
        %v794 = vld [vmem:[%s723] sm:$0xff]
        %v795 = vld [vmem:[%s723 + $0x8] sm:$0xff]
        %v798 = vlaneseq
        %v799 = vshrl.u32 %v798, 7
        %v800 = vsub.s32 0, %v799
        %v801 = vrot.slane %v786, %v800
        %v802 = vlaneseq
        %v803 = vshrl.u32 %v802, 7
        %v804 = vsub.s32 0, %v803
        %v805 = vrot.slane %v787, %v804
        %806 = vset.pattern.permute.xlu0 0
        %807 = vperm.xlu0 %806, %v801
        %v808 = vpop.permute.xlu0 %807
        %810 = vset.pattern.permute.xlu0 0
        %811 = vperm.xlu0 %810, %v805
        %v812 = vpop.permute.xlu0 %811
        %v814 = vmul.f32 %v808, %v794
        %v815 = vmul.f32 %v812, %v795
        %v816 = vpack.c.bf16 %v815, %v814
        %v817 = vld [vmem:[%s2] sm:$0x3]
        %vm818 = vcmask 31744
        %v820 = vsel %vm818, %v816, 0
        %vm822 = vcmask 1041408
        %v824 = vsel %vm822, %v817, 0
        %826 = vmatprep.subr.bf16.mxu0 0
        %827 = vmatpush1.bf16.msra.mxu0 %v824
        %828 = vmatprep.subr.bf16.mxu0 0
        %829 = vmatpush1.bf16.msra.mxu0 0
        %830 = vmatprep.subr.bf16.mxu0 0
        %831 = vmatpush1.bf16.msra.mxu0 0
        %832 = vmatprep.subr.bf16.mxu0 0
        %833 = vmatpush1.bf16.msra.mxu0 0
        %834 = vmatprep.subr.bf16.mxu0 0
        %835 = vmatpush1.bf16.msra.mxu0 0
        %836 = vmatprep.subr.bf16.mxu0 0
        %837 = vmatpush1.bf16.msra.mxu0 0
        %838 = vmatprep.subr.bf16.mxu0 0
        %839 = vmatpush1.bf16.msra.mxu0 0
        %840 = vmatprep.subr.bf16.mxu0 0
        %841 = vmatpush1.bf16.msra.mxu0 0
        %842 = vmatprep.subr.bf16.mxu0 0
        %843 = vmatpush1.bf16.msra.mxu0 0
        %844 = vmatprep.subr.bf16.mxu0 0
        %845 = vmatpush1.bf16.msra.mxu0 0
        %846 = vmatprep.subr.bf16.mxu0 0
        %847 = vmatpush1.bf16.msra.mxu0 0
        %848 = vmatprep.subr.bf16.mxu0 0
        %849 = vmatpush1.bf16.msra.mxu0 0
        %850 = vmatprep.subr.bf16.mxu0 0
        %851 = vmatpush1.bf16.msra.mxu0 0
        %852 = vmatprep.subr.bf16.mxu0 0
        %853 = vmatpush1.bf16.msra.mxu0 0
        %854 = vmatprep.subr.bf16.mxu0 0
        %855 = vmatpush1.bf16.msra.mxu0 0
        %856 = vmatprep.subr.bf16.mxu0 0
        %857 = vmatpush1.bf16.msra.mxu0 0
        %858 = vmatprep.mubr.bf16.mxu0 0
        %859 = vmatmul.mubr.bf16.gmra.mrb[0].mxu0 %v820
        %v860 = vpop.f32.mrb[0].mxu0
        %v861 = vadd.f32 0.0, %v860
        %v862 = vpop.f32.mrb[0].mxu0
        %v863 = vpop.f32.mrb[0].mxu0
        %v864 = vadd.f32 0.0, %v863
        %v865 = vpop.f32.mrb[0].mxu0
        %866 = vdwg.mxu0
        %v867 = vld [vmem:[%s3] sm:$0x1]
        %869 = vset.pattern.permute.xlu0 0
        %870 = vperm.xlu0 %869, %v792
        %v871 = vpop.permute.xlu0 %870
        %v873 = vlaneseq
        %v874 = vshrl.u32 %v873, 7
        %v875 = vsub.s32 0, %v874
        %v876 = vrot.slane %v871, %v875
        %878 = vset.pattern.permute.xlu0 0
        %879 = vperm.xlu0 %878, %v793
        %v880 = vpop.permute.xlu0 %879
        %v882 = vlaneseq
        %v883 = vshrl.u32 %v882, 7
        %v884 = vsub.s32 0, %v883
        %v885 = vrot.slane %v880, %v884
        %v886 = vmul.f32 %v876, %v867
        %v887 = vmul.f32 %v885, %v867
        %v890 = vlaneseq
        %v891 = vshrl.u32 %v890, 7
        %v892 = vsub.s32 0, %v891
        %v893 = vrot.slane %v886, %v892
        %v894 = vlaneseq
        %v895 = vshrl.u32 %v894, 7
        %v896 = vsub.s32 0, %v895
        %v897 = vrot.slane %v887, %v896
        %v900 = vadd.f32 %v861, %v893
        %v901 = vadd.f32 %v864, %v897
        %vm902 = vcmask 261120
        %903 = vst.msk [vmem:[#allocation2] sm:$0xff] %vm902, %v900
        %904 = vst.msk [vmem:[#allocation2 + $0x8] sm:$0xff] %vm902, %v901
      $region92: #{tpu_custom_call.1} parent=87 // pred_fallthru
        _
      %v905 = vld [vmem:[#allocation2] sm:$0xff]
      %v906 = vld [vmem:[#allocation2 + $0x8] sm:$0xff]
      %v907 = vld [vmem:[%s729] sm:$0xf]
      %v908 = vld [vmem:[%s729 + $0x4] sm:$0xf]
      %v909 = vld [vmem:[%s729 + $0x8] sm:$0xf]
      %v910 = vld [vmem:[%s729 + $0xc] sm:$0xf]
      %v911 = vld [vmem:[%s732] sm:$0x1]
      %v912 = vld [vmem:[%s737] sm:$0xf]
      %v913 = vld [vmem:[%s737 + $0x4] sm:$0xf]
      %v914 = vld [vmem:[%s737 + $0x8] sm:$0xf]
      %v915 = vld [vmem:[%s737 + $0xc] sm:$0xf]
      %v916 = vld [vmem:[%s740] sm:$0x1]
      %v917 = vld [vmem:[%s743] sm:$0x1]
      %v918 = vld [vmem:[%s746] sm:$0x1]
      %v919 = vld [vmem:[%s751] sm:$0xf]
      %v920 = vld [vmem:[%s751 + $0x4] sm:$0xf]
      %v921 = vld [vmem:[%s751 + $0x8] sm:$0xf]
      %v922 = vld [vmem:[%s751 + $0xc] sm:$0xf]
      %v923 = vld [vmem:[%s754] sm:$0x1]
      %v924 = vld [vmem:[%s759] sm:$0xf]
      %v925 = vld [vmem:[%s759 + $0x4] sm:$0xf]
      %v926 = vld [vmem:[%s759 + $0x8] sm:$0xf]
      %v927 = vld [vmem:[%s759 + $0xc] sm:$0xf]
      %v928 = vld [vmem:[%s759 + $0x10] sm:$0xf]
      %v929 = vld [vmem:[%s759 + $0x14] sm:$0xf]
      %v930 = vld [vmem:[%s759 + $0x18] sm:$0xf]
      %v931 = vld [vmem:[%s759 + $0x1c] sm:$0xf]
      %v932 = vld [vmem:[%s759 + $0x20] sm:$0xf]
      %v933 = vld [vmem:[%s759 + $0x24] sm:$0xf]
      %v934 = vld [vmem:[%s759 + $0x28] sm:$0xf]
      %v935 = vld [vmem:[%s759 + $0x2c] sm:$0xf]
      %v936 = vld [vmem:[%s759 + $0x30] sm:$0xf]
      %v937 = vld [vmem:[%s759 + $0x34] sm:$0xf]
      %v938 = vld [vmem:[%s759 + $0x38] sm:$0xf]
      %v939 = vld [vmem:[%s759 + $0x3c] sm:$0xf]
      %v940 = vld [vmem:[%s762] sm:$0x1]
      %v941 = vld [vmem:[%s765] sm:$0x1]
      %v942 = vld [vmem:[%s768] sm:$0x1]
      %v943 = vpack.c.bf16 %v906, %v905
      %v945 = vlaneseq
      %v946 = vshrl.u32 %v945, 7
      %v947 = vsub.s32 0, %v946
      %v948 = vrot.slane %v911, %v947
      %v954 = vunpack.c.l.b16 %v907
      %v955 = vunpack.c.l.b16 %v908
      %v956 = vunpack.c.l.b16 %v909
      %v957 = vunpack.c.l.b16 %v910
      %v958 = vpack.c.b16 %v955, %v954
      %v959 = vpack.c.b16 %v957, %v956
      %vm962 = vcmask 261120
      %v964 = vsel %vm962, %v943, 0
      %966 = vmatprep.subr.bf16.mxu0 0
      %967 = vmatpush1.bf16.msra.mxu0 %v958
      %968 = vmatprep.subr.bf16.mxu0 0
      %969 = vmatpush1.bf16.msra.mxu0 %v959
      %970 = vmatprep.subr.bf16.mxu0 0
      %971 = vmatpush1.bf16.msra.mxu0 0
      %972 = vmatprep.subr.bf16.mxu0 0
      %973 = vmatpush1.bf16.msra.mxu0 0
      %974 = vmatprep.subr.bf16.mxu0 0
      %975 = vmatpush1.bf16.msra.mxu0 0
      %976 = vmatprep.subr.bf16.mxu0 0
      %977 = vmatpush1.bf16.msra.mxu0 0
      %978 = vmatprep.subr.bf16.mxu0 0
      %979 = vmatpush1.bf16.msra.mxu0 0
      %980 = vmatprep.subr.bf16.mxu0 0
      %981 = vmatpush1.bf16.msra.mxu0 0
      %982 = vmatprep.subr.bf16.mxu0 0
      %983 = vmatpush1.bf16.msra.mxu0 0
      %984 = vmatprep.subr.bf16.mxu0 0
      %985 = vmatpush1.bf16.msra.mxu0 0
      %986 = vmatprep.subr.bf16.mxu0 0
      %987 = vmatpush1.bf16.msra.mxu0 0
      %988 = vmatprep.subr.bf16.mxu0 0
      %989 = vmatpush1.bf16.msra.mxu0 0
      %990 = vmatprep.subr.bf16.mxu0 0
      %991 = vmatpush1.bf16.msra.mxu0 0
      %992 = vmatprep.subr.bf16.mxu0 0
      %993 = vmatpush1.bf16.msra.mxu0 0
      %994 = vmatprep.subr.bf16.mxu0 0
      %995 = vmatpush1.bf16.msra.mxu0 0
      %996 = vmatprep.subr.bf16.mxu0 0
      %997 = vmatpush1.bf16.msra.mxu0 0
      %998 = vmatprep.mubr.bf16.mxu0 0
      %999 = vmatmul.mubr.bf16.gmra.mrb[0].mxu0 %v964
      %v1000 = vpop.f32.mrb[0].mxu0
      %v1001 = vadd.f32 %v948, %v1000
      %v1002 = vpop.f32.mrb[0].mxu0
      %v1003 = vpop.f32.mrb[0].mxu0
      %v1004 = vadd.f32 %v948, %v1003
      %v1005 = vpop.f32.mrb[0].mxu0
      %1006 = vdwg.mxu0
      %v1007 = vpack.c.bf16 %v1001, %v1001
      %v1008 = vpack.c.bf16 %v1004, %v1004
      %1010 = vrot.lane.b32.xlu0 %v1007, 96
      %v1011 = vpop.permute.xlu0 %1010
      %vm1012 = vcmask 64512
      %v1014 = vsel %vm1012, %v1007, 0
      %v1017 = vsel %vm1012, %v1011, 0
      %1019 = vmatprep.subr.bf16.mxu0 0
      %1020 = vmatpush1.bf16.xpose.msra.mxu0 %v1017
      %1021 = vmatprep.subr.bf16.mxu0 0
      %1022 = vmatpush1.bf16.xpose.msra.mxu0 0
      %1023 = vmatprep.subr.bf16.mxu0 0
      %1024 = vmatpush1.bf16.xpose.msra.mxu0 0
      %1025 = vmatprep.subr.bf16.mxu0 0
      %1026 = vmatpush1.bf16.xpose.msra.mxu0 0
      %1027 = vmatprep.subr.bf16.mxu0 0
      %1028 = vmatpush1.bf16.xpose.msra.mxu0 0
      %1029 = vmatprep.subr.bf16.mxu0 0
      %1030 = vmatpush1.bf16.xpose.msra.mxu0 0
      %1031 = vmatprep.subr.bf16.mxu0 0
      %1032 = vmatpush1.bf16.xpose.msra.mxu0 0
      %1033 = vmatprep.subr.bf16.mxu0 0
      %1034 = vmatpush1.bf16.xpose.msra.mxu0 0
      %1035 = vmatprep.subr.bf16.mxu0 0
      %1036 = vmatpush1.bf16.xpose.msra.mxu0 0
      %1037 = vmatprep.subr.bf16.mxu0 0
      %1038 = vmatpush1.bf16.xpose.msra.mxu0 0
      %1039 = vmatprep.subr.bf16.mxu0 0
      %1040 = vmatpush1.bf16.xpose.msra.mxu0 0
      %1041 = vmatprep.subr.bf16.mxu0 0
      %1042 = vmatpush1.bf16.xpose.msra.mxu0 0
      %1043 = vmatprep.subr.bf16.mxu0 0
      %1044 = vmatpush1.bf16.xpose.msra.mxu0 0
      %1045 = vmatprep.subr.bf16.mxu0 0
      %1046 = vmatpush1.bf16.xpose.msra.mxu0 0
      %1047 = vmatprep.subr.bf16.mxu0 0
      %1048 = vmatpush1.bf16.xpose.msra.mxu0 0
      %1049 = vmatprep.subr.bf16.mxu0 0
      %1050 = vmatpush1.bf16.xpose.msra.mxu0 0
      %1051 = vmatprep.mubr.bf16.mxu0 0
      %1052 = vmatmul.mubr.bf16.gmra.mrb[0].mxu0 %v1014
      %v1053 = vpop.f32.mrb[0].mxu0
      %v1054 = vadd.f32 0.0, %v1053
      %v1055 = vpop.f32.mrb[0].mxu0
      %v1056 = vpop.f32.mrb[0].mxu0
      %v1057 = vpop.f32.mrb[0].mxu0
      %1058 = vdwg.mxu0
      %1060 = vrot.lane.b32.xlu0 %v1008, 96
      %v1061 = vpop.permute.xlu0 %1060
      %v1063 = vsel %vm1012, %v1008, 0
      %v1066 = vsel %vm1012, %v1061, 0
      %1068 = vmatprep.subr.bf16.mxu0 0
      %1069 = vmatpush1.bf16.xpose.msra.mxu0 %v1066
      %1070 = vmatprep.subr.bf16.mxu0 0
      %1071 = vmatpush1.bf16.xpose.msra.mxu0 0
      %1072 = vmatprep.subr.bf16.mxu0 0
      %1073 = vmatpush1.bf16.xpose.msra.mxu0 0
      %1074 = vmatprep.subr.bf16.mxu0 0
      %1075 = vmatpush1.bf16.xpose.msra.mxu0 0
      %1076 = vmatprep.subr.bf16.mxu0 0
      %1077 = vmatpush1.bf16.xpose.msra.mxu0 0
      %1078 = vmatprep.subr.bf16.mxu0 0
      %1079 = vmatpush1.bf16.xpose.msra.mxu0 0
      %1080 = vmatprep.subr.bf16.mxu0 0
      %1081 = vmatpush1.bf16.xpose.msra.mxu0 0
      %1082 = vmatprep.subr.bf16.mxu0 0
      %1083 = vmatpush1.bf16.xpose.msra.mxu0 0
      %1084 = vmatprep.subr.bf16.mxu0 0
      %1085 = vmatpush1.bf16.xpose.msra.mxu0 0
      %1086 = vmatprep.subr.bf16.mxu0 0
      %1087 = vmatpush1.bf16.xpose.msra.mxu0 0
      %1088 = vmatprep.subr.bf16.mxu0 0
      %1089 = vmatpush1.bf16.xpose.msra.mxu0 0
      %1090 = vmatprep.subr.bf16.mxu0 0
      %1091 = vmatpush1.bf16.xpose.msra.mxu0 0
      %1092 = vmatprep.subr.bf16.mxu0 0
      %1093 = vmatpush1.bf16.xpose.msra.mxu0 0
      %1094 = vmatprep.subr.bf16.mxu0 0
      %1095 = vmatpush1.bf16.xpose.msra.mxu0 0
      %1096 = vmatprep.subr.bf16.mxu0 0
      %1097 = vmatpush1.bf16.xpose.msra.mxu0 0
      %1098 = vmatprep.subr.bf16.mxu0 0
      %1099 = vmatpush1.bf16.xpose.msra.mxu0 0
      %1100 = vmatprep.mubr.bf16.mxu0 0
      %1101 = vmatmul.mubr.bf16.gmra.mrb[0].mxu0 %v1063
      %v1102 = vpop.f32.mrb[0].mxu0
      %v1103 = vadd.f32 0.0, %v1102
      %v1104 = vpop.f32.mrb[0].mxu0
      %v1105 = vpop.f32.mrb[0].mxu0
      %v1106 = vpop.f32.mrb[0].mxu0
      %1107 = vdwg.mxu0
      %v1108 = vmul.f32 %v1054, 0.35355338
      %v1109 = vmul.f32 %v1103, 0.35355338
      %v1110 = vsel %vm1012, %v1108, -inf
      %1111 = vmax.xlane.f32.xlu0 %v1110
      %v1112 = vpop.xlane.xlu0 %1111
      %v1113 = vsel %vm1012, %v1109, -inf
      %1114 = vmax.xlane.f32.xlu0 %v1113
      %v1115 = vpop.xlane.xlu0 %1114
      %v1116 = vsub.f32 %v1108, %v1112
      %v1117 = vsub.f32 %v1109, %v1115
      %v1118 = vmul.f32 %v1116, 1.442695
      %v1119 = vpow.pop %v1118
      %v1120 = vmul.f32 %v1117, 1.442695
      %v1121 = vpow.pop %v1120
      %v1122 = vsel %vm1012, %v1119, 0.0
      %1123 = vadd.xlane.f32.xlu0 %v1122
      %v1124 = vpop.xlane.xlu0 %1123
      %v1125 = vsel %vm1012, %v1121, 0.0
      %1126 = vadd.xlane.f32.xlu0 %v1125
      %v1127 = vpop.xlane.xlu0 %1126
      %v1128 = vrcp.pop %v1124
      %v1129 = vrcp.pop %v1127
      %v1130 = vmul.f32 %v1119, %v1128
      %v1131 = vmul.f32 %v1121, %v1129
      %v1132 = vpack.c.bf16 %v1130, %v1130
      %v1133 = vpack.c.bf16 %v1131, %v1131
      %1134 = vrot.lane.b32.xlu0 %v1007, 64
      %v1135 = vpop.permute.xlu0 %1134
      %v1137 = vsel %vm1012, %v1132, 0
      %vm1139 = vcmask 1043456
      %v1141 = vsel %vm1139, %v1135, 0
      %1143 = vmatprep.subr.bf16.mxu0 0
      %1144 = vmatpush1.bf16.msra.mxu0 %v1141
      %1145 = vmatprep.subr.bf16.mxu0 0
      %1146 = vmatpush1.bf16.msra.mxu0 0
      %1147 = vmatprep.subr.bf16.mxu0 0
      %1148 = vmatpush1.bf16.msra.mxu0 0
      %1149 = vmatprep.subr.bf16.mxu0 0
      %1150 = vmatpush1.bf16.msra.mxu0 0
      %1151 = vmatprep.subr.bf16.mxu0 0
      %1152 = vmatpush1.bf16.msra.mxu0 0
      %1153 = vmatprep.subr.bf16.mxu0 0
      %1154 = vmatpush1.bf16.msra.mxu0 0
      %1155 = vmatprep.subr.bf16.mxu0 0
      %1156 = vmatpush1.bf16.msra.mxu0 0
      %1157 = vmatprep.subr.bf16.mxu0 0
      %1158 = vmatpush1.bf16.msra.mxu0 0
      %1159 = vmatprep.subr.bf16.mxu0 0
      %1160 = vmatpush1.bf16.msra.mxu0 0
      %1161 = vmatprep.subr.bf16.mxu0 0
      %1162 = vmatpush1.bf16.msra.mxu0 0
      %1163 = vmatprep.subr.bf16.mxu0 0
      %1164 = vmatpush1.bf16.msra.mxu0 0
      %1165 = vmatprep.subr.bf16.mxu0 0
      %1166 = vmatpush1.bf16.msra.mxu0 0
      %1167 = vmatprep.subr.bf16.mxu0 0
      %1168 = vmatpush1.bf16.msra.mxu0 0
      %1169 = vmatprep.subr.bf16.mxu0 0
      %1170 = vmatpush1.bf16.msra.mxu0 0
      %1171 = vmatprep.subr.bf16.mxu0 0
      %1172 = vmatpush1.bf16.msra.mxu0 0
      %1173 = vmatprep.subr.bf16.mxu0 0
      %1174 = vmatpush1.bf16.msra.mxu0 0
      %1175 = vmatprep.mubr.bf16.mxu0 0
      %1176 = vmatmul.mubr.bf16.gmra.mrb[0].mxu0 %v1137
      %v1177 = vpop.f32.mrb[0].mxu0
      %v1178 = vadd.f32 0.0, %v1177
      %v1179 = vpop.f32.mrb[0].mxu0
      %v1180 = vpop.f32.mrb[0].mxu0
      %v1181 = vpop.f32.mrb[0].mxu0
      %1182 = vdwg.mxu0
      %1183 = vrot.lane.b32.xlu0 %v1008, 64
      %v1184 = vpop.permute.xlu0 %1183
      %v1186 = vsel %vm1012, %v1133, 0
      %v1189 = vsel %vm1139, %v1184, 0
      %1191 = vmatprep.subr.bf16.mxu0 0
      %1192 = vmatpush1.bf16.msra.mxu0 %v1189
      %1193 = vmatprep.subr.bf16.mxu0 0
      %1194 = vmatpush1.bf16.msra.mxu0 0
      %1195 = vmatprep.subr.bf16.mxu0 0
      %1196 = vmatpush1.bf16.msra.mxu0 0
      %1197 = vmatprep.subr.bf16.mxu0 0
      %1198 = vmatpush1.bf16.msra.mxu0 0
      %1199 = vmatprep.subr.bf16.mxu0 0
      %1200 = vmatpush1.bf16.msra.mxu0 0
      %1201 = vmatprep.subr.bf16.mxu0 0
      %1202 = vmatpush1.bf16.msra.mxu0 0
      %1203 = vmatprep.subr.bf16.mxu0 0
      %1204 = vmatpush1.bf16.msra.mxu0 0
      %1205 = vmatprep.subr.bf16.mxu0 0
      %1206 = vmatpush1.bf16.msra.mxu0 0
      %1207 = vmatprep.subr.bf16.mxu0 0
      %1208 = vmatpush1.bf16.msra.mxu0 0
      %1209 = vmatprep.subr.bf16.mxu0 0
      %1210 = vmatpush1.bf16.msra.mxu0 0
      %1211 = vmatprep.subr.bf16.mxu0 0
      %1212 = vmatpush1.bf16.msra.mxu0 0
      %1213 = vmatprep.subr.bf16.mxu0 0
      %1214 = vmatpush1.bf16.msra.mxu0 0
      %1215 = vmatprep.subr.bf16.mxu0 0
      %1216 = vmatpush1.bf16.msra.mxu0 0
      %1217 = vmatprep.subr.bf16.mxu0 0
      %1218 = vmatpush1.bf16.msra.mxu0 0
      %1219 = vmatprep.subr.bf16.mxu0 0
      %1220 = vmatpush1.bf16.msra.mxu0 0
      %1221 = vmatprep.subr.bf16.mxu0 0
      %1222 = vmatpush1.bf16.msra.mxu0 0
      %1223 = vmatprep.mubr.bf16.mxu0 0
      %1224 = vmatmul.mubr.bf16.gmra.mrb[0].mxu0 %v1186
      %v1225 = vpop.f32.mrb[0].mxu0
      %v1226 = vadd.f32 0.0, %v1225
      %v1227 = vpop.f32.mrb[0].mxu0
      %v1228 = vpop.f32.mrb[0].mxu0
      %v1229 = vpop.f32.mrb[0].mxu0
      %1230 = vdwg.mxu0
      %1231 = vrot.lane.b32.xlu0 %v1007, 120
      %v1232 = vpop.permute.xlu0 %1231
      %1233 = vrot.lane.b32.xlu0 %v1007, 88
      %v1234 = vpop.permute.xlu0 %1233
      %v1236 = vsel %vm1012, %v1232, 0
      %v1239 = vsel %vm1012, %v1234, 0
      %1241 = vmatprep.subr.bf16.mxu0 0
      %1242 = vmatpush1.bf16.xpose.msra.mxu0 %v1239
      %1243 = vmatprep.subr.bf16.mxu0 0
      %1244 = vmatpush1.bf16.xpose.msra.mxu0 0
      %1245 = vmatprep.subr.bf16.mxu0 0
      %1246 = vmatpush1.bf16.xpose.msra.mxu0 0
      %1247 = vmatprep.subr.bf16.mxu0 0
      %1248 = vmatpush1.bf16.xpose.msra.mxu0 0
      %1249 = vmatprep.subr.bf16.mxu0 0
      %1250 = vmatpush1.bf16.xpose.msra.mxu0 0
      %1251 = vmatprep.subr.bf16.mxu0 0
      %1252 = vmatpush1.bf16.xpose.msra.mxu0 0
      %1253 = vmatprep.subr.bf16.mxu0 0
      %1254 = vmatpush1.bf16.xpose.msra.mxu0 0
      %1255 = vmatprep.subr.bf16.mxu0 0
      %1256 = vmatpush1.bf16.xpose.msra.mxu0 0
      %1257 = vmatprep.subr.bf16.mxu0 0
      %1258 = vmatpush1.bf16.xpose.msra.mxu0 0
      %1259 = vmatprep.subr.bf16.mxu0 0
      %1260 = vmatpush1.bf16.xpose.msra.mxu0 0
      %1261 = vmatprep.subr.bf16.mxu0 0
      %1262 = vmatpush1.bf16.xpose.msra.mxu0 0
      %1263 = vmatprep.subr.bf16.mxu0 0
      %1264 = vmatpush1.bf16.xpose.msra.mxu0 0
      %1265 = vmatprep.subr.bf16.mxu0 0
      %1266 = vmatpush1.bf16.xpose.msra.mxu0 0
      %1267 = vmatprep.subr.bf16.mxu0 0
      %1268 = vmatpush1.bf16.xpose.msra.mxu0 0
      %1269 = vmatprep.subr.bf16.mxu0 0
      %1270 = vmatpush1.bf16.xpose.msra.mxu0 0
      %1271 = vmatprep.subr.bf16.mxu0 0
      %1272 = vmatpush1.bf16.xpose.msra.mxu0 0
      %1273 = vmatprep.mubr.bf16.mxu0 0
      %1274 = vmatmul.mubr.bf16.gmra.mrb[0].mxu0 %v1236
      %v1275 = vpop.f32.mrb[0].mxu0
      %v1276 = vadd.f32 0.0, %v1275
      %v1277 = vpop.f32.mrb[0].mxu0
      %v1278 = vpop.f32.mrb[0].mxu0
      %v1279 = vpop.f32.mrb[0].mxu0
      %1280 = vdwg.mxu0
      %1281 = vrot.lane.b32.xlu0 %v1008, 120
      %v1282 = vpop.permute.xlu0 %1281
      %1283 = vrot.lane.b32.xlu0 %v1008, 88
      %v1284 = vpop.permute.xlu0 %1283
      %v1286 = vsel %vm1012, %v1282, 0
      %v1289 = vsel %vm1012, %v1284, 0
      %1291 = vmatprep.subr.bf16.mxu0 0
      %1292 = vmatpush1.bf16.xpose.msra.mxu0 %v1289
      %1293 = vmatprep.subr.bf16.mxu0 0
      %1294 = vmatpush1.bf16.xpose.msra.mxu0 0
      %1295 = vmatprep.subr.bf16.mxu0 0
      %1296 = vmatpush1.bf16.xpose.msra.mxu0 0
      %1297 = vmatprep.subr.bf16.mxu0 0
      %1298 = vmatpush1.bf16.xpose.msra.mxu0 0
      %1299 = vmatprep.subr.bf16.mxu0 0
      %1300 = vmatpush1.bf16.xpose.msra.mxu0 0
      %1301 = vmatprep.subr.bf16.mxu0 0
      %1302 = vmatpush1.bf16.xpose.msra.mxu0 0
      %1303 = vmatprep.subr.bf16.mxu0 0
      %1304 = vmatpush1.bf16.xpose.msra.mxu0 0
      %1305 = vmatprep.subr.bf16.mxu0 0
      %1306 = vmatpush1.bf16.xpose.msra.mxu0 0
      %1307 = vmatprep.subr.bf16.mxu0 0
      %1308 = vmatpush1.bf16.xpose.msra.mxu0 0
      %1309 = vmatprep.subr.bf16.mxu0 0
      %1310 = vmatpush1.bf16.xpose.msra.mxu0 0
      %1311 = vmatprep.subr.bf16.mxu0 0
      %1312 = vmatpush1.bf16.xpose.msra.mxu0 0
      %1313 = vmatprep.subr.bf16.mxu0 0
      %1314 = vmatpush1.bf16.xpose.msra.mxu0 0
      %1315 = vmatprep.subr.bf16.mxu0 0
      %1316 = vmatpush1.bf16.xpose.msra.mxu0 0
      %1317 = vmatprep.subr.bf16.mxu0 0
      %1318 = vmatpush1.bf16.xpose.msra.mxu0 0
      %1319 = vmatprep.subr.bf16.mxu0 0
      %1320 = vmatpush1.bf16.xpose.msra.mxu0 0
      %1321 = vmatprep.subr.bf16.mxu0 0
      %1322 = vmatpush1.bf16.xpose.msra.mxu0 0
      %1323 = vmatprep.mubr.bf16.mxu0 0
      %1324 = vmatmul.mubr.bf16.gmra.mrb[0].mxu0 %v1286
      %v1325 = vpop.f32.mrb[0].mxu0
      %v1326 = vadd.f32 0.0, %v1325
      %v1327 = vpop.f32.mrb[0].mxu0
      %v1328 = vpop.f32.mrb[0].mxu0
      %v1329 = vpop.f32.mrb[0].mxu0
      %1330 = vdwg.mxu0
      %v1331 = vmul.f32 %v1276, 0.35355338
      %v1332 = vmul.f32 %v1326, 0.35355338
      %v1333 = vsel %vm1012, %v1331, -inf
      %1334 = vmax.xlane.f32.xlu0 %v1333
      %v1335 = vpop.xlane.xlu0 %1334
      %v1336 = vsel %vm1012, %v1332, -inf
      %1337 = vmax.xlane.f32.xlu0 %v1336
      %v1338 = vpop.xlane.xlu0 %1337
      %v1339 = vsub.f32 %v1331, %v1335
      %v1340 = vsub.f32 %v1332, %v1338
      %v1341 = vmul.f32 %v1339, 1.442695
      %v1342 = vpow.pop %v1341
      %v1343 = vmul.f32 %v1340, 1.442695
      %v1344 = vpow.pop %v1343
      %v1345 = vsel %vm1012, %v1342, 0.0
      %1346 = vadd.xlane.f32.xlu0 %v1345
      %v1347 = vpop.xlane.xlu0 %1346
      %v1348 = vsel %vm1012, %v1344, 0.0
      %1349 = vadd.xlane.f32.xlu0 %v1348
      %v1350 = vpop.xlane.xlu0 %1349
      %v1351 = vrcp.pop %v1347
      %v1352 = vrcp.pop %v1350
      %v1353 = vmul.f32 %v1342, %v1351
      %v1354 = vmul.f32 %v1344, %v1352
      %v1355 = vpack.c.bf16 %v1353, %v1353
      %v1356 = vpack.c.bf16 %v1354, %v1354
      %1357 = vrot.lane.b32.xlu0 %v1007, 56
      %v1358 = vpop.permute.xlu0 %1357
      %v1360 = vsel %vm1012, %v1355, 0
      %v1363 = vsel %vm1139, %v1358, 0
      %1365 = vmatprep.subr.bf16.mxu0 0
      %1366 = vmatpush1.bf16.msra.mxu0 %v1363
      %1367 = vmatprep.subr.bf16.mxu0 0
      %1368 = vmatpush1.bf16.msra.mxu0 0
      %1369 = vmatprep.subr.bf16.mxu0 0
      %1370 = vmatpush1.bf16.msra.mxu0 0
      %1371 = vmatprep.subr.bf16.mxu0 0
      %1372 = vmatpush1.bf16.msra.mxu0 0
      %1373 = vmatprep.subr.bf16.mxu0 0
      %1374 = vmatpush1.bf16.msra.mxu0 0
      %1375 = vmatprep.subr.bf16.mxu0 0
      %1376 = vmatpush1.bf16.msra.mxu0 0
      %1377 = vmatprep.subr.bf16.mxu0 0
      %1378 = vmatpush1.bf16.msra.mxu0 0
      %1379 = vmatprep.subr.bf16.mxu0 0
      %1380 = vmatpush1.bf16.msra.mxu0 0
      %1381 = vmatprep.subr.bf16.mxu0 0
      %1382 = vmatpush1.bf16.msra.mxu0 0
      %1383 = vmatprep.subr.bf16.mxu0 0
      %1384 = vmatpush1.bf16.msra.mxu0 0
      %1385 = vmatprep.subr.bf16.mxu0 0
      %1386 = vmatpush1.bf16.msra.mxu0 0
      %1387 = vmatprep.subr.bf16.mxu0 0
      %1388 = vmatpush1.bf16.msra.mxu0 0
      %1389 = vmatprep.subr.bf16.mxu0 0
      %1390 = vmatpush1.bf16.msra.mxu0 0
      %1391 = vmatprep.subr.bf16.mxu0 0
      %1392 = vmatpush1.bf16.msra.mxu0 0
      %1393 = vmatprep.subr.bf16.mxu0 0
      %1394 = vmatpush1.bf16.msra.mxu0 0
      %1395 = vmatprep.subr.bf16.mxu0 0
      %1396 = vmatpush1.bf16.msra.mxu0 0
      %1397 = vmatprep.mubr.bf16.mxu0 0
      %1398 = vmatmul.mubr.bf16.gmra.mrb[0].mxu0 %v1360
      %v1399 = vpop.f32.mrb[0].mxu0
      %v1400 = vadd.f32 0.0, %v1399
      %v1401 = vpop.f32.mrb[0].mxu0
      %v1402 = vpop.f32.mrb[0].mxu0
      %v1403 = vpop.f32.mrb[0].mxu0
      %1404 = vdwg.mxu0
      %1405 = vrot.lane.b32.xlu0 %v1008, 56
      %v1406 = vpop.permute.xlu0 %1405
      %v1408 = vsel %vm1012, %v1356, 0
      %v1411 = vsel %vm1139, %v1406, 0
      %1413 = vmatprep.subr.bf16.mxu0 0
      %1414 = vmatpush1.bf16.msra.mxu0 %v1411
      %1415 = vmatprep.subr.bf16.mxu0 0
      %1416 = vmatpush1.bf16.msra.mxu0 0
      %1417 = vmatprep.subr.bf16.mxu0 0
      %1418 = vmatpush1.bf16.msra.mxu0 0
      %1419 = vmatprep.subr.bf16.mxu0 0
      %1420 = vmatpush1.bf16.msra.mxu0 0
      %1421 = vmatprep.subr.bf16.mxu0 0
      %1422 = vmatpush1.bf16.msra.mxu0 0
      %1423 = vmatprep.subr.bf16.mxu0 0
      %1424 = vmatpush1.bf16.msra.mxu0 0
      %1425 = vmatprep.subr.bf16.mxu0 0
      %1426 = vmatpush1.bf16.msra.mxu0 0
      %1427 = vmatprep.subr.bf16.mxu0 0
      %1428 = vmatpush1.bf16.msra.mxu0 0
      %1429 = vmatprep.subr.bf16.mxu0 0
      %1430 = vmatpush1.bf16.msra.mxu0 0
      %1431 = vmatprep.subr.bf16.mxu0 0
      %1432 = vmatpush1.bf16.msra.mxu0 0
      %1433 = vmatprep.subr.bf16.mxu0 0
      %1434 = vmatpush1.bf16.msra.mxu0 0
      %1435 = vmatprep.subr.bf16.mxu0 0
      %1436 = vmatpush1.bf16.msra.mxu0 0
      %1437 = vmatprep.subr.bf16.mxu0 0
      %1438 = vmatpush1.bf16.msra.mxu0 0
      %1439 = vmatprep.subr.bf16.mxu0 0
      %1440 = vmatpush1.bf16.msra.mxu0 0
      %1441 = vmatprep.subr.bf16.mxu0 0
      %1442 = vmatpush1.bf16.msra.mxu0 0
      %1443 = vmatprep.subr.bf16.mxu0 0
      %1444 = vmatpush1.bf16.msra.mxu0 0
      %1445 = vmatprep.mubr.bf16.mxu0 0
      %1446 = vmatmul.mubr.bf16.gmra.mrb[0].mxu0 %v1408
      %v1447 = vpop.f32.mrb[0].mxu0
      %v1448 = vadd.f32 0.0, %v1447
      %v1449 = vpop.f32.mrb[0].mxu0
      %v1450 = vpop.f32.mrb[0].mxu0
      %v1451 = vpop.f32.mrb[0].mxu0
      %1452 = vdwg.mxu0
      %1453 = vrot.lane.b32.xlu0 %v1007, 112
      %v1454 = vpop.permute.xlu0 %1453
      %1455 = vrot.lane.b32.xlu0 %v1007, 80
      %v1456 = vpop.permute.xlu0 %1455
      %v1458 = vsel %vm1012, %v1454, 0
      %v1461 = vsel %vm1012, %v1456, 0
      %1463 = vmatprep.subr.bf16.mxu0 0
      %1464 = vmatpush1.bf16.xpose.msra.mxu0 %v1461
      %1465 = vmatprep.subr.bf16.mxu0 0
      %1466 = vmatpush1.bf16.xpose.msra.mxu0 0
      %1467 = vmatprep.subr.bf16.mxu0 0
      %1468 = vmatpush1.bf16.xpose.msra.mxu0 0
      %1469 = vmatprep.subr.bf16.mxu0 0
      %1470 = vmatpush1.bf16.xpose.msra.mxu0 0
      %1471 = vmatprep.subr.bf16.mxu0 0
      %1472 = vmatpush1.bf16.xpose.msra.mxu0 0
      %1473 = vmatprep.subr.bf16.mxu0 0
      %1474 = vmatpush1.bf16.xpose.msra.mxu0 0
      %1475 = vmatprep.subr.bf16.mxu0 0
      %1476 = vmatpush1.bf16.xpose.msra.mxu0 0
      %1477 = vmatprep.subr.bf16.mxu0 0
      %1478 = vmatpush1.bf16.xpose.msra.mxu0 0
      %1479 = vmatprep.subr.bf16.mxu0 0
      %1480 = vmatpush1.bf16.xpose.msra.mxu0 0
      %1481 = vmatprep.subr.bf16.mxu0 0
      %1482 = vmatpush1.bf16.xpose.msra.mxu0 0
      %1483 = vmatprep.subr.bf16.mxu0 0
      %1484 = vmatpush1.bf16.xpose.msra.mxu0 0
      %1485 = vmatprep.subr.bf16.mxu0 0
      %1486 = vmatpush1.bf16.xpose.msra.mxu0 0
      %1487 = vmatprep.subr.bf16.mxu0 0
      %1488 = vmatpush1.bf16.xpose.msra.mxu0 0
      %1489 = vmatprep.subr.bf16.mxu0 0
      %1490 = vmatpush1.bf16.xpose.msra.mxu0 0
      %1491 = vmatprep.subr.bf16.mxu0 0
      %1492 = vmatpush1.bf16.xpose.msra.mxu0 0
      %1493 = vmatprep.subr.bf16.mxu0 0
      %1494 = vmatpush1.bf16.xpose.msra.mxu0 0
      %1495 = vmatprep.mubr.bf16.mxu0 0
      %1496 = vmatmul.mubr.bf16.gmra.mrb[0].mxu0 %v1458
      %v1497 = vpop.f32.mrb[0].mxu0
      %v1498 = vadd.f32 0.0, %v1497
      %v1499 = vpop.f32.mrb[0].mxu0
      %v1500 = vpop.f32.mrb[0].mxu0
      %v1501 = vpop.f32.mrb[0].mxu0
      %1502 = vdwg.mxu0
      %1503 = vrot.lane.b32.xlu0 %v1008, 112
      %v1504 = vpop.permute.xlu0 %1503
      %1505 = vrot.lane.b32.xlu0 %v1008, 80
      %v1506 = vpop.permute.xlu0 %1505
      %v1508 = vsel %vm1012, %v1504, 0
      %v1511 = vsel %vm1012, %v1506, 0
      %1513 = vmatprep.subr.bf16.mxu0 0
      %1514 = vmatpush1.bf16.xpose.msra.mxu0 %v1511
      %1515 = vmatprep.subr.bf16.mxu0 0
      %1516 = vmatpush1.bf16.xpose.msra.mxu0 0
      %1517 = vmatprep.subr.bf16.mxu0 0
      %1518 = vmatpush1.bf16.xpose.msra.mxu0 0
      %1519 = vmatprep.subr.bf16.mxu0 0
      %1520 = vmatpush1.bf16.xpose.msra.mxu0 0
      %1521 = vmatprep.subr.bf16.mxu0 0
      %1522 = vmatpush1.bf16.xpose.msra.mxu0 0
      %1523 = vmatprep.subr.bf16.mxu0 0
      %1524 = vmatpush1.bf16.xpose.msra.mxu0 0
      %1525 = vmatprep.subr.bf16.mxu0 0
      %1526 = vmatpush1.bf16.xpose.msra.mxu0 0
      %1527 = vmatprep.subr.bf16.mxu0 0
      %1528 = vmatpush1.bf16.xpose.msra.mxu0 0
      %1529 = vmatprep.subr.bf16.mxu0 0
      %1530 = vmatpush1.bf16.xpose.msra.mxu0 0
      %1531 = vmatprep.subr.bf16.mxu0 0
      %1532 = vmatpush1.bf16.xpose.msra.mxu0 0
      %1533 = vmatprep.subr.bf16.mxu0 0
      %1534 = vmatpush1.bf16.xpose.msra.mxu0 0
      %1535 = vmatprep.subr.bf16.mxu0 0
      %1536 = vmatpush1.bf16.xpose.msra.mxu0 0
      %1537 = vmatprep.subr.bf16.mxu0 0
      %1538 = vmatpush1.bf16.xpose.msra.mxu0 0
      %1539 = vmatprep.subr.bf16.mxu0 0
      %1540 = vmatpush1.bf16.xpose.msra.mxu0 0
      %1541 = vmatprep.subr.bf16.mxu0 0
      %1542 = vmatpush1.bf16.xpose.msra.mxu0 0
      %1543 = vmatprep.subr.bf16.mxu0 0
      %1544 = vmatpush1.bf16.xpose.msra.mxu0 0
      %1545 = vmatprep.mubr.bf16.mxu0 0
      %1546 = vmatmul.mubr.bf16.gmra.mrb[0].mxu0 %v1508
      %v1547 = vpop.f32.mrb[0].mxu0
      %v1548 = vadd.f32 0.0, %v1547
      %v1549 = vpop.f32.mrb[0].mxu0
      %v1550 = vpop.f32.mrb[0].mxu0
      %v1551 = vpop.f32.mrb[0].mxu0
      %1552 = vdwg.mxu0
      %v1553 = vmul.f32 %v1498, 0.35355338
      %v1554 = vmul.f32 %v1548, 0.35355338
      %v1555 = vsel %vm1012, %v1553, -inf
      %1556 = vmax.xlane.f32.xlu0 %v1555
      %v1557 = vpop.xlane.xlu0 %1556
      %v1558 = vsel %vm1012, %v1554, -inf
      %1559 = vmax.xlane.f32.xlu0 %v1558
      %v1560 = vpop.xlane.xlu0 %1559
      %v1561 = vsub.f32 %v1553, %v1557
      %v1562 = vsub.f32 %v1554, %v1560
      %v1563 = vmul.f32 %v1561, 1.442695
      %v1564 = vpow.pop %v1563
      %v1565 = vmul.f32 %v1562, 1.442695
      %v1566 = vpow.pop %v1565
      %v1567 = vsel %vm1012, %v1564, 0.0
      %1568 = vadd.xlane.f32.xlu0 %v1567
      %v1569 = vpop.xlane.xlu0 %1568
      %v1570 = vsel %vm1012, %v1566, 0.0
      %1571 = vadd.xlane.f32.xlu0 %v1570
      %v1572 = vpop.xlane.xlu0 %1571
      %v1573 = vrcp.pop %v1569
      %v1574 = vrcp.pop %v1572
      %v1575 = vmul.f32 %v1564, %v1573
      %v1576 = vmul.f32 %v1566, %v1574
      %v1577 = vpack.c.bf16 %v1575, %v1575
      %v1578 = vpack.c.bf16 %v1576, %v1576
      %1579 = vrot.lane.b32.xlu0 %v1007, 48
      %v1580 = vpop.permute.xlu0 %1579
      %v1582 = vsel %vm1012, %v1577, 0
      %v1585 = vsel %vm1139, %v1580, 0
      %1587 = vmatprep.subr.bf16.mxu0 0
      %1588 = vmatpush1.bf16.msra.mxu0 %v1585
      %1589 = vmatprep.subr.bf16.mxu0 0
      %1590 = vmatpush1.bf16.msra.mxu0 0
      %1591 = vmatprep.subr.bf16.mxu0 0
      %1592 = vmatpush1.bf16.msra.mxu0 0
      %1593 = vmatprep.subr.bf16.mxu0 0
      %1594 = vmatpush1.bf16.msra.mxu0 0
      %1595 = vmatprep.subr.bf16.mxu0 0
      %1596 = vmatpush1.bf16.msra.mxu0 0
      %1597 = vmatprep.subr.bf16.mxu0 0
      %1598 = vmatpush1.bf16.msra.mxu0 0
      %1599 = vmatprep.subr.bf16.mxu0 0
      %1600 = vmatpush1.bf16.msra.mxu0 0
      %1601 = vmatprep.subr.bf16.mxu0 0
      %1602 = vmatpush1.bf16.msra.mxu0 0
      %1603 = vmatprep.subr.bf16.mxu0 0
      %1604 = vmatpush1.bf16.msra.mxu0 0
      %1605 = vmatprep.subr.bf16.mxu0 0
      %1606 = vmatpush1.bf16.msra.mxu0 0
      %1607 = vmatprep.subr.bf16.mxu0 0
      %1608 = vmatpush1.bf16.msra.mxu0 0
      %1609 = vmatprep.subr.bf16.mxu0 0
      %1610 = vmatpush1.bf16.msra.mxu0 0
      %1611 = vmatprep.subr.bf16.mxu0 0
      %1612 = vmatpush1.bf16.msra.mxu0 0
      %1613 = vmatprep.subr.bf16.mxu0 0
      %1614 = vmatpush1.bf16.msra.mxu0 0
      %1615 = vmatprep.subr.bf16.mxu0 0
      %1616 = vmatpush1.bf16.msra.mxu0 0
      %1617 = vmatprep.subr.bf16.mxu0 0
      %1618 = vmatpush1.bf16.msra.mxu0 0
      %1619 = vmatprep.mubr.bf16.mxu0 0
      %1620 = vmatmul.mubr.bf16.gmra.mrb[0].mxu0 %v1582
      %v1621 = vpop.f32.mrb[0].mxu0
      %v1622 = vadd.f32 0.0, %v1621
      %v1623 = vpop.f32.mrb[0].mxu0
      %v1624 = vpop.f32.mrb[0].mxu0
      %v1625 = vpop.f32.mrb[0].mxu0
      %1626 = vdwg.mxu0
      %1627 = vrot.lane.b32.xlu0 %v1008, 48
      %v1628 = vpop.permute.xlu0 %1627
      %v1630 = vsel %vm1012, %v1578, 0
      %v1633 = vsel %vm1139, %v1628, 0
      %1635 = vmatprep.subr.bf16.mxu0 0
      %1636 = vmatpush1.bf16.msra.mxu0 %v1633
      %1637 = vmatprep.subr.bf16.mxu0 0
      %1638 = vmatpush1.bf16.msra.mxu0 0
      %1639 = vmatprep.subr.bf16.mxu0 0
      %1640 = vmatpush1.bf16.msra.mxu0 0
      %1641 = vmatprep.subr.bf16.mxu0 0
      %1642 = vmatpush1.bf16.msra.mxu0 0
      %1643 = vmatprep.subr.bf16.mxu0 0
      %1644 = vmatpush1.bf16.msra.mxu0 0
      %1645 = vmatprep.subr.bf16.mxu0 0
      %1646 = vmatpush1.bf16.msra.mxu0 0
      %1647 = vmatprep.subr.bf16.mxu0 0
      %1648 = vmatpush1.bf16.msra.mxu0 0
      %1649 = vmatprep.subr.bf16.mxu0 0
      %1650 = vmatpush1.bf16.msra.mxu0 0
      %1651 = vmatprep.subr.bf16.mxu0 0
      %1652 = vmatpush1.bf16.msra.mxu0 0
      %1653 = vmatprep.subr.bf16.mxu0 0
      %1654 = vmatpush1.bf16.msra.mxu0 0
      %1655 = vmatprep.subr.bf16.mxu0 0
      %1656 = vmatpush1.bf16.msra.mxu0 0
      %1657 = vmatprep.subr.bf16.mxu0 0
      %1658 = vmatpush1.bf16.msra.mxu0 0
      %1659 = vmatprep.subr.bf16.mxu0 0
      %1660 = vmatpush1.bf16.msra.mxu0 0
      %1661 = vmatprep.subr.bf16.mxu0 0
      %1662 = vmatpush1.bf16.msra.mxu0 0
      %1663 = vmatprep.subr.bf16.mxu0 0
      %1664 = vmatpush1.bf16.msra.mxu0 0
      %1665 = vmatprep.subr.bf16.mxu0 0
      %1666 = vmatpush1.bf16.msra.mxu0 0
      %1667 = vmatprep.mubr.bf16.mxu0 0
      %1668 = vmatmul.mubr.bf16.gmra.mrb[0].mxu0 %v1630
      %v1669 = vpop.f32.mrb[0].mxu0
      %v1670 = vadd.f32 0.0, %v1669
      %v1671 = vpop.f32.mrb[0].mxu0
      %v1672 = vpop.f32.mrb[0].mxu0
      %v1673 = vpop.f32.mrb[0].mxu0
      %1674 = vdwg.mxu0
      %1675 = vrot.lane.b32.xlu0 %v1007, 104
      %v1676 = vpop.permute.xlu0 %1675
      %1677 = vrot.lane.b32.xlu0 %v1007, 72
      %v1678 = vpop.permute.xlu0 %1677
      %v1680 = vsel %vm1012, %v1676, 0
      %v1683 = vsel %vm1012, %v1678, 0
      %1685 = vmatprep.subr.bf16.mxu0 0
      %1686 = vmatpush1.bf16.xpose.msra.mxu0 %v1683
      %1687 = vmatprep.subr.bf16.mxu0 0
      %1688 = vmatpush1.bf16.xpose.msra.mxu0 0
      %1689 = vmatprep.subr.bf16.mxu0 0
      %1690 = vmatpush1.bf16.xpose.msra.mxu0 0
      %1691 = vmatprep.subr.bf16.mxu0 0
      %1692 = vmatpush1.bf16.xpose.msra.mxu0 0
      %1693 = vmatprep.subr.bf16.mxu0 0
      %1694 = vmatpush1.bf16.xpose.msra.mxu0 0
      %1695 = vmatprep.subr.bf16.mxu0 0
      %1696 = vmatpush1.bf16.xpose.msra.mxu0 0
      %1697 = vmatprep.subr.bf16.mxu0 0
      %1698 = vmatpush1.bf16.xpose.msra.mxu0 0
      %1699 = vmatprep.subr.bf16.mxu0 0
      %1700 = vmatpush1.bf16.xpose.msra.mxu0 0
      %1701 = vmatprep.subr.bf16.mxu0 0
      %1702 = vmatpush1.bf16.xpose.msra.mxu0 0
      %1703 = vmatprep.subr.bf16.mxu0 0
      %1704 = vmatpush1.bf16.xpose.msra.mxu0 0
      %1705 = vmatprep.subr.bf16.mxu0 0
      %1706 = vmatpush1.bf16.xpose.msra.mxu0 0
      %1707 = vmatprep.subr.bf16.mxu0 0
      %1708 = vmatpush1.bf16.xpose.msra.mxu0 0
      %1709 = vmatprep.subr.bf16.mxu0 0
      %1710 = vmatpush1.bf16.xpose.msra.mxu0 0
      %1711 = vmatprep.subr.bf16.mxu0 0
      %1712 = vmatpush1.bf16.xpose.msra.mxu0 0
      %1713 = vmatprep.subr.bf16.mxu0 0
      %1714 = vmatpush1.bf16.xpose.msra.mxu0 0
      %1715 = vmatprep.subr.bf16.mxu0 0
      %1716 = vmatpush1.bf16.xpose.msra.mxu0 0
      %1717 = vmatprep.mubr.bf16.mxu0 0
      %1718 = vmatmul.mubr.bf16.gmra.mrb[0].mxu0 %v1680
      %v1719 = vpop.f32.mrb[0].mxu0
      %v1720 = vadd.f32 0.0, %v1719
      %v1721 = vpop.f32.mrb[0].mxu0
      %v1722 = vpop.f32.mrb[0].mxu0
      %v1723 = vpop.f32.mrb[0].mxu0
      %1724 = vdwg.mxu0
      %1725 = vrot.lane.b32.xlu0 %v1008, 104
      %v1726 = vpop.permute.xlu0 %1725
      %1727 = vrot.lane.b32.xlu0 %v1008, 72
      %v1728 = vpop.permute.xlu0 %1727
      %v1730 = vsel %vm1012, %v1726, 0
      %v1733 = vsel %vm1012, %v1728, 0
      %1735 = vmatprep.subr.bf16.mxu0 0
      %1736 = vmatpush1.bf16.xpose.msra.mxu0 %v1733
      %1737 = vmatprep.subr.bf16.mxu0 0
      %1738 = vmatpush1.bf16.xpose.msra.mxu0 0
      %1739 = vmatprep.subr.bf16.mxu0 0
      %1740 = vmatpush1.bf16.xpose.msra.mxu0 0
      %1741 = vmatprep.subr.bf16.mxu0 0
      %1742 = vmatpush1.bf16.xpose.msra.mxu0 0
      %1743 = vmatprep.subr.bf16.mxu0 0
      %1744 = vmatpush1.bf16.xpose.msra.mxu0 0
      %1745 = vmatprep.subr.bf16.mxu0 0
      %1746 = vmatpush1.bf16.xpose.msra.mxu0 0
      %1747 = vmatprep.subr.bf16.mxu0 0
      %1748 = vmatpush1.bf16.xpose.msra.mxu0 0
      %1749 = vmatprep.subr.bf16.mxu0 0
      %1750 = vmatpush1.bf16.xpose.msra.mxu0 0
      %1751 = vmatprep.subr.bf16.mxu0 0
      %1752 = vmatpush1.bf16.xpose.msra.mxu0 0
      %1753 = vmatprep.subr.bf16.mxu0 0
      %1754 = vmatpush1.bf16.xpose.msra.mxu0 0
      %1755 = vmatprep.subr.bf16.mxu0 0
      %1756 = vmatpush1.bf16.xpose.msra.mxu0 0
      %1757 = vmatprep.subr.bf16.mxu0 0
      %1758 = vmatpush1.bf16.xpose.msra.mxu0 0
      %1759 = vmatprep.subr.bf16.mxu0 0
      %1760 = vmatpush1.bf16.xpose.msra.mxu0 0
      %1761 = vmatprep.subr.bf16.mxu0 0
      %1762 = vmatpush1.bf16.xpose.msra.mxu0 0
      %1763 = vmatprep.subr.bf16.mxu0 0
      %1764 = vmatpush1.bf16.xpose.msra.mxu0 0
      %1765 = vmatprep.subr.bf16.mxu0 0
      %1766 = vmatpush1.bf16.xpose.msra.mxu0 0
      %1767 = vmatprep.mubr.bf16.mxu0 0
      %1768 = vmatmul.mubr.bf16.gmra.mrb[0].mxu0 %v1730
      %v1769 = vpop.f32.mrb[0].mxu0
      %v1770 = vadd.f32 0.0, %v1769
      %v1771 = vpop.f32.mrb[0].mxu0
      %v1772 = vpop.f32.mrb[0].mxu0
      %v1773 = vpop.f32.mrb[0].mxu0
      %1774 = vdwg.mxu0
      %v1775 = vmul.f32 %v1720, 0.35355338
      %v1776 = vmul.f32 %v1770, 0.35355338
      %v1777 = vsel %vm1012, %v1775, -inf
      %1778 = vmax.xlane.f32.xlu0 %v1777
      %v1779 = vpop.xlane.xlu0 %1778
      %v1780 = vsel %vm1012, %v1776, -inf
      %1781 = vmax.xlane.f32.xlu0 %v1780
      %v1782 = vpop.xlane.xlu0 %1781
      %v1783 = vsub.f32 %v1775, %v1779
      %v1784 = vsub.f32 %v1776, %v1782
      %v1785 = vmul.f32 %v1783, 1.442695
      %v1786 = vpow.pop %v1785
      %v1787 = vmul.f32 %v1784, 1.442695
      %v1788 = vpow.pop %v1787
      %v1789 = vsel %vm1012, %v1786, 0.0
      %1790 = vadd.xlane.f32.xlu0 %v1789
      %v1791 = vpop.xlane.xlu0 %1790
      %v1792 = vsel %vm1012, %v1788, 0.0
      %1793 = vadd.xlane.f32.xlu0 %v1792
      %v1794 = vpop.xlane.xlu0 %1793
      %v1795 = vrcp.pop %v1791
      %v1796 = vrcp.pop %v1794
      %v1797 = vmul.f32 %v1786, %v1795
      %v1798 = vmul.f32 %v1788, %v1796
      %v1799 = vpack.c.bf16 %v1797, %v1797
      %v1800 = vpack.c.bf16 %v1798, %v1798
      %1801 = vrot.lane.b32.xlu0 %v1007, 40
      %v1802 = vpop.permute.xlu0 %1801
      %v1804 = vsel %vm1012, %v1799, 0
      %v1807 = vsel %vm1139, %v1802, 0
      %1809 = vmatprep.subr.bf16.mxu0 0
      %1810 = vmatpush1.bf16.msra.mxu0 %v1807
      %1811 = vmatprep.subr.bf16.mxu0 0
      %1812 = vmatpush1.bf16.msra.mxu0 0
      %1813 = vmatprep.subr.bf16.mxu0 0
      %1814 = vmatpush1.bf16.msra.mxu0 0
      %1815 = vmatprep.subr.bf16.mxu0 0
      %1816 = vmatpush1.bf16.msra.mxu0 0
      %1817 = vmatprep.subr.bf16.mxu0 0
      %1818 = vmatpush1.bf16.msra.mxu0 0
      %1819 = vmatprep.subr.bf16.mxu0 0
      %1820 = vmatpush1.bf16.msra.mxu0 0
      %1821 = vmatprep.subr.bf16.mxu0 0
      %1822 = vmatpush1.bf16.msra.mxu0 0
      %1823 = vmatprep.subr.bf16.mxu0 0
      %1824 = vmatpush1.bf16.msra.mxu0 0
      %1825 = vmatprep.subr.bf16.mxu0 0
      %1826 = vmatpush1.bf16.msra.mxu0 0
      %1827 = vmatprep.subr.bf16.mxu0 0
      %1828 = vmatpush1.bf16.msra.mxu0 0
      %1829 = vmatprep.subr.bf16.mxu0 0
      %1830 = vmatpush1.bf16.msra.mxu0 0
      %1831 = vmatprep.subr.bf16.mxu0 0
      %1832 = vmatpush1.bf16.msra.mxu0 0
      %1833 = vmatprep.subr.bf16.mxu0 0
      %1834 = vmatpush1.bf16.msra.mxu0 0
      %1835 = vmatprep.subr.bf16.mxu0 0
      %1836 = vmatpush1.bf16.msra.mxu0 0
      %1837 = vmatprep.subr.bf16.mxu0 0
      %1838 = vmatpush1.bf16.msra.mxu0 0
      %1839 = vmatprep.subr.bf16.mxu0 0
      %1840 = vmatpush1.bf16.msra.mxu0 0
      %1841 = vmatprep.mubr.bf16.mxu0 0
      %1842 = vmatmul.mubr.bf16.gmra.mrb[0].mxu0 %v1804
      %v1843 = vpop.f32.mrb[0].mxu0
      %v1844 = vadd.f32 0.0, %v1843
      %v1845 = vpop.f32.mrb[0].mxu0
      %v1846 = vpop.f32.mrb[0].mxu0
      %v1847 = vpop.f32.mrb[0].mxu0
      %1848 = vdwg.mxu0
      %1849 = vrot.lane.b32.xlu0 %v1008, 40
      %v1850 = vpop.permute.xlu0 %1849
      %v1852 = vsel %vm1012, %v1800, 0
      %v1855 = vsel %vm1139, %v1850, 0
      %1857 = vmatprep.subr.bf16.mxu0 0
      %1858 = vmatpush1.bf16.msra.mxu0 %v1855
      %1859 = vmatprep.subr.bf16.mxu0 0
      %1860 = vmatpush1.bf16.msra.mxu0 0
      %1861 = vmatprep.subr.bf16.mxu0 0
      %1862 = vmatpush1.bf16.msra.mxu0 0
      %1863 = vmatprep.subr.bf16.mxu0 0
      %1864 = vmatpush1.bf16.msra.mxu0 0
      %1865 = vmatprep.subr.bf16.mxu0 0
      %1866 = vmatpush1.bf16.msra.mxu0 0
      %1867 = vmatprep.subr.bf16.mxu0 0
      %1868 = vmatpush1.bf16.msra.mxu0 0
      %1869 = vmatprep.subr.bf16.mxu0 0
      %1870 = vmatpush1.bf16.msra.mxu0 0
      %1871 = vmatprep.subr.bf16.mxu0 0
      %1872 = vmatpush1.bf16.msra.mxu0 0
      %1873 = vmatprep.subr.bf16.mxu0 0
      %1874 = vmatpush1.bf16.msra.mxu0 0
      %1875 = vmatprep.subr.bf16.mxu0 0
      %1876 = vmatpush1.bf16.msra.mxu0 0
      %1877 = vmatprep.subr.bf16.mxu0 0
      %1878 = vmatpush1.bf16.msra.mxu0 0
      %1879 = vmatprep.subr.bf16.mxu0 0
      %1880 = vmatpush1.bf16.msra.mxu0 0
      %1881 = vmatprep.subr.bf16.mxu0 0
      %1882 = vmatpush1.bf16.msra.mxu0 0
      %1883 = vmatprep.subr.bf16.mxu0 0
      %1884 = vmatpush1.bf16.msra.mxu0 0
      %1885 = vmatprep.subr.bf16.mxu0 0
      %1886 = vmatpush1.bf16.msra.mxu0 0
      %1887 = vmatprep.subr.bf16.mxu0 0
      %1888 = vmatpush1.bf16.msra.mxu0 0
      %1889 = vmatprep.mubr.bf16.mxu0 0
      %1890 = vmatmul.mubr.bf16.gmra.mrb[0].mxu0 %v1852
      %v1891 = vpop.f32.mrb[0].mxu0
      %v1892 = vadd.f32 0.0, %v1891
      %v1893 = vpop.f32.mrb[0].mxu0
      %v1894 = vpop.f32.mrb[0].mxu0
      %v1895 = vpop.f32.mrb[0].mxu0
      %1896 = vdwg.mxu0
      %1899 = vrot.lane.b32.xlu0 %v1400, 8
      %v1900 = vpop.permute.xlu0 %1899
      %1901 = vrot.lane.b32.xlu0 %v1448, 8
      %v1902 = vpop.permute.xlu0 %1901
      %1907 = vrot.lane.b32.xlu0 %v1622, 16
      %v1908 = vpop.permute.xlu0 %1907
      %1909 = vrot.lane.b32.xlu0 %v1670, 16
      %v1910 = vpop.permute.xlu0 %1909
      %1915 = vrot.lane.b32.xlu0 %v1844, 24
      %v1916 = vpop.permute.xlu0 %1915
      %1917 = vrot.lane.b32.xlu0 %v1892, 24
      %v1918 = vpop.permute.xlu0 %1917
      %v1921 = vsel %vm1012, %v1178, %v1900
      %v1922 = vsel %vm1012, %v1226, %v1902
      %vm1923 = vcmask 130048
      %v1924 = vsel %vm1923, %v1921, %v1908
      %v1925 = vsel %vm1923, %v1922, %v1910
      %vm1926 = vcmask 195584
      %v1927 = vsel %vm1926, %v1924, %v1916
      %v1928 = vsel %vm1926, %v1925, %v1918
      %v1929 = vpack.c.bf16 %v1928, %v1927
      %v1931 = vlaneseq
      %v1932 = vshrl.u32 %v1931, 7
      %v1933 = vsub.s32 0, %v1932
      %v1934 = vrot.slane %v916, %v1933
      %v1940 = vunpack.c.l.b16 %v912
      %v1941 = vunpack.c.l.b16 %v913
      %v1942 = vunpack.c.l.b16 %v914
      %v1943 = vunpack.c.l.b16 %v915
      %v1944 = vpack.c.b16 %v1941, %v1940
      %v1945 = vpack.c.b16 %v1943, %v1942
      %v1949 = vsel %vm962, %v1929, 0
      %1951 = vmatprep.subr.bf16.mxu0 0
      %1952 = vmatpush1.bf16.msra.mxu0 %v1944
      %1953 = vmatprep.subr.bf16.mxu0 0
      %1954 = vmatpush1.bf16.msra.mxu0 %v1945
      %1955 = vmatprep.subr.bf16.mxu0 0
      %1956 = vmatpush1.bf16.msra.mxu0 0
      %1957 = vmatprep.subr.bf16.mxu0 0
      %1958 = vmatpush1.bf16.msra.mxu0 0
      %1959 = vmatprep.subr.bf16.mxu0 0
      %1960 = vmatpush1.bf16.msra.mxu0 0
      %1961 = vmatprep.subr.bf16.mxu0 0
      %1962 = vmatpush1.bf16.msra.mxu0 0
      %1963 = vmatprep.subr.bf16.mxu0 0
      %1964 = vmatpush1.bf16.msra.mxu0 0
      %1965 = vmatprep.subr.bf16.mxu0 0
      %1966 = vmatpush1.bf16.msra.mxu0 0
      %1967 = vmatprep.subr.bf16.mxu0 0
      %1968 = vmatpush1.bf16.msra.mxu0 0
      %1969 = vmatprep.subr.bf16.mxu0 0
      %1970 = vmatpush1.bf16.msra.mxu0 0
      %1971 = vmatprep.subr.bf16.mxu0 0
      %1972 = vmatpush1.bf16.msra.mxu0 0
      %1973 = vmatprep.subr.bf16.mxu0 0
      %1974 = vmatpush1.bf16.msra.mxu0 0
      %1975 = vmatprep.subr.bf16.mxu0 0
      %1976 = vmatpush1.bf16.msra.mxu0 0
      %1977 = vmatprep.subr.bf16.mxu0 0
      %1978 = vmatpush1.bf16.msra.mxu0 0
      %1979 = vmatprep.subr.bf16.mxu0 0
      %1980 = vmatpush1.bf16.msra.mxu0 0
      %1981 = vmatprep.subr.bf16.mxu0 0
      %1982 = vmatpush1.bf16.msra.mxu0 0
      %1983 = vmatprep.mubr.bf16.mxu0 0
      %1984 = vmatmul.mubr.bf16.gmra.mrb[0].mxu0 %v1949
      %v1985 = vpop.f32.mrb[0].mxu0
      %v1986 = vadd.f32 %v1934, %v1985
      %v1987 = vpop.f32.mrb[0].mxu0
      %v1988 = vpop.f32.mrb[0].mxu0
      %v1989 = vadd.f32 %v1934, %v1988
      %v1990 = vpop.f32.mrb[0].mxu0
      %1991 = vdwg.mxu0
      %v1992 = vadd.f32 %v905, %v1986
      %v1993 = vadd.f32 %v906, %v1989
      %v1994 = vsel %vm962, %v1992, 0.0
      %1995 = vadd.xlane.f32.xlu0 %v1994
      %v1996 = vpop.xlane.xlu0 %1995
      %v1997 = vsel %vm962, %v1993, 0.0
      %1998 = vadd.xlane.f32.xlu0 %v1997
      %v1999 = vpop.xlane.xlu0 %1998
      %v2000 = vrcp.pop 32.0
      %v2001 = vmul.f32 %v1996, %v2000
      %v2002 = vmul.f32 %v1999, %v2000
      %v2003 = vsub.f32 %v1992, %v2001
      %v2004 = vsub.f32 %v1993, %v2002
      %v2005 = vmul.f32 %v2003, %v2003
      %v2006 = vmul.f32 %v2004, %v2004
      %v2007 = vsel %vm962, %v2005, 0.0
      %2008 = vadd.xlane.f32.xlu0 %v2007
      %v2009 = vpop.xlane.xlu0 %2008
      %v2010 = vsel %vm962, %v2006, 0.0
      %2011 = vadd.xlane.f32.xlu0 %v2010
      %v2012 = vpop.xlane.xlu0 %2011
      %v2013 = vmul.f32 %v2009, %v2000
      %v2014 = vmul.f32 %v2012, %v2000
      %v2015 = vadd.f32 %v2013, 1e-05
      %v2016 = vadd.f32 %v2014, 1e-05
      %v2017 = vrsqrt.pop %v2015
      %v2018 = vrsqrt.pop %v2016
      %v2019 = vmul.f32 %v2003, %v2017
      %v2020 = vmul.f32 %v2004, %v2018
      %v2022 = vlaneseq
      %v2023 = vshrl.u32 %v2022, 7
      %v2024 = vsub.s32 0, %v2023
      %v2025 = vrot.slane %v917, %v2024
      %v2027 = vmul.f32 %v2019, %v2025
      %v2028 = vmul.f32 %v2020, %v2025
      %v2030 = vlaneseq
      %v2031 = vshrl.u32 %v2030, 7
      %v2032 = vsub.s32 0, %v2031
      %v2033 = vrot.slane %v918, %v2032
      %v2035 = vadd.f32 %v2027, %v2033
      %v2036 = vadd.f32 %v2028, %v2033
      %v2037 = vpack.c.bf16 %v2036, %v2035
      %v2039 = vlaneseq
      %v2040 = vshrl.u32 %v2039, 7
      %v2041 = vsub.s32 0, %v2040
      %v2042 = vrot.slane %v923, %v2041
      %v2048 = vunpack.c.l.b16 %v919
      %v2049 = vunpack.c.l.b16 %v920
      %v2050 = vunpack.c.l.b16 %v921
      %v2051 = vunpack.c.l.b16 %v922
      %v2052 = vpack.c.b16 %v2049, %v2048
      %v2053 = vpack.c.b16 %v2051, %v2050
      %v2057 = vsel %vm962, %v2037, 0
      %2059 = vmatprep.subr.bf16.mxu0 0
      %2060 = vmatpush1.bf16.msra.mxu0 %v2052
      %2061 = vmatprep.subr.bf16.mxu0 0
      %2062 = vmatpush1.bf16.msra.mxu0 %v2053
      %2063 = vmatprep.subr.bf16.mxu0 0
      %2064 = vmatpush1.bf16.msra.mxu0 0
      %2065 = vmatprep.subr.bf16.mxu0 0
      %2066 = vmatpush1.bf16.msra.mxu0 0
      %2067 = vmatprep.subr.bf16.mxu0 0
      %2068 = vmatpush1.bf16.msra.mxu0 0
      %2069 = vmatprep.subr.bf16.mxu0 0
      %2070 = vmatpush1.bf16.msra.mxu0 0
      %2071 = vmatprep.subr.bf16.mxu0 0
      %2072 = vmatpush1.bf16.msra.mxu0 0
      %2073 = vmatprep.subr.bf16.mxu0 0
      %2074 = vmatpush1.bf16.msra.mxu0 0
      %2075 = vmatprep.subr.bf16.mxu0 0
      %2076 = vmatpush1.bf16.msra.mxu0 0
      %2077 = vmatprep.subr.bf16.mxu0 0
      %2078 = vmatpush1.bf16.msra.mxu0 0
      %2079 = vmatprep.subr.bf16.mxu0 0
      %2080 = vmatpush1.bf16.msra.mxu0 0
      %2081 = vmatprep.subr.bf16.mxu0 0
      %2082 = vmatpush1.bf16.msra.mxu0 0
      %2083 = vmatprep.subr.bf16.mxu0 0
      %2084 = vmatpush1.bf16.msra.mxu0 0
      %2085 = vmatprep.subr.bf16.mxu0 0
      %2086 = vmatpush1.bf16.msra.mxu0 0
      %2087 = vmatprep.subr.bf16.mxu0 0
      %2088 = vmatpush1.bf16.msra.mxu0 0
      %2089 = vmatprep.subr.bf16.mxu0 0
      %2090 = vmatpush1.bf16.msra.mxu0 0
      %2091 = vmatprep.mubr.bf16.mxu0 0
      %2092 = vmatmul.mubr.bf16.gmra.mrb[0].mxu0 %v2057
      %v2093 = vpop.f32.mrb[0].mxu0
      %v2094 = vadd.f32 %v2042, %v2093
      %v2095 = vpop.f32.mrb[0].mxu0
      %v2096 = vpop.f32.mrb[0].mxu0
      %v2097 = vadd.f32 %v2042, %v2096
      %v2098 = vpop.f32.mrb[0].mxu0
      %2099 = vdwg.mxu0
      %v2100 = vmax.f32 %v2094, 0.0
      %v2101 = vmax.f32 %v2097, 0.0
      %v2102 = vpack.c.bf16 %v2101, %v2100
      %v2104 = vlaneseq
      %v2105 = vshrl.u32 %v2104, 7
      %v2106 = vsub.s32 0, %v2105
      %v2107 = vrot.slane %v940, %v2106
      %v2125 = vunpack.c.l.b16 %v924
      %v2126 = vunpack.c.l.b16 %v925
      %v2127 = vunpack.c.l.b16 %v926
      %v2128 = vunpack.c.l.b16 %v927
      %v2129 = vunpack.c.l.b16 %v928
      %v2130 = vunpack.c.l.b16 %v929
      %v2131 = vunpack.c.l.b16 %v930
      %v2132 = vunpack.c.l.b16 %v931
      %v2133 = vunpack.c.l.b16 %v932
      %v2134 = vunpack.c.l.b16 %v933
      %v2135 = vunpack.c.l.b16 %v934
      %v2136 = vunpack.c.l.b16 %v935
      %v2137 = vunpack.c.l.b16 %v936
      %v2138 = vunpack.c.l.b16 %v937
      %v2139 = vunpack.c.l.b16 %v938
      %v2140 = vunpack.c.l.b16 %v939
      %v2141 = vpack.c.b16 %v2126, %v2125
      %v2142 = vpack.c.b16 %v2128, %v2127
      %v2143 = vpack.c.b16 %v2130, %v2129
      %v2144 = vpack.c.b16 %v2132, %v2131
      %v2145 = vpack.c.b16 %v2134, %v2133
      %v2146 = vpack.c.b16 %v2136, %v2135
      %v2147 = vpack.c.b16 %v2138, %v2137
      %v2148 = vpack.c.b16 %v2140, %v2139
      %2157 = vmatprep.subr.bf16.mxu0 0
      %2158 = vmatpush1.bf16.msra.mxu0 %v2141
      %2159 = vmatprep.subr.bf16.mxu0 0
      %2160 = vmatpush1.bf16.msra.mxu0 %v2142
      %2161 = vmatprep.subr.bf16.mxu0 0
      %2162 = vmatpush1.bf16.msra.mxu0 %v2143
      %2163 = vmatprep.subr.bf16.mxu0 0
      %2164 = vmatpush1.bf16.msra.mxu0 %v2144
      %2165 = vmatprep.subr.bf16.mxu0 0
      %2166 = vmatpush1.bf16.msra.mxu0 %v2145
      %2167 = vmatprep.subr.bf16.mxu0 0
      %2168 = vmatpush1.bf16.msra.mxu0 %v2146
      %2169 = vmatprep.subr.bf16.mxu0 0
      %2170 = vmatpush1.bf16.msra.mxu0 %v2147
      %2171 = vmatprep.subr.bf16.mxu0 0
      %2172 = vmatpush1.bf16.msra.mxu0 %v2148
      %2173 = vmatprep.subr.bf16.mxu0 0
      %2174 = vmatpush1.bf16.msra.mxu0 0
      %2175 = vmatprep.subr.bf16.mxu0 0
      %2176 = vmatpush1.bf16.msra.mxu0 0
      %2177 = vmatprep.subr.bf16.mxu0 0
      %2178 = vmatpush1.bf16.msra.mxu0 0
      %2179 = vmatprep.subr.bf16.mxu0 0
      %2180 = vmatpush1.bf16.msra.mxu0 0
      %2181 = vmatprep.subr.bf16.mxu0 0
      %2182 = vmatpush1.bf16.msra.mxu0 0
      %2183 = vmatprep.subr.bf16.mxu0 0
      %2184 = vmatpush1.bf16.msra.mxu0 0
      %2185 = vmatprep.subr.bf16.mxu0 0
      %2186 = vmatpush1.bf16.msra.mxu0 0
      %2187 = vmatprep.subr.bf16.mxu0 0
      %2188 = vmatpush1.bf16.msra.mxu0 0
      %2189 = vmatprep.mubr.bf16.mxu0 0
      %2190 = vmatmul.mubr.bf16.gmra.mrb[0].mxu0 %v2102
      %v2191 = vpop.f32.mrb[0].mxu0
      %v2192 = vadd.f32 %v2107, %v2191
      %v2193 = vpop.f32.mrb[0].mxu0
      %v2194 = vpop.f32.mrb[0].mxu0
      %v2195 = vadd.f32 %v2107, %v2194
      %v2196 = vpop.f32.mrb[0].mxu0
      %2197 = vdwg.mxu0
      %v2198 = vadd.f32 %v2035, %v2192
      %v2199 = vadd.f32 %v2036, %v2195
      %v2200 = vsel %vm962, %v2198, 0.0
      %2201 = vadd.xlane.f32.xlu0 %v2200
      %v2202 = vpop.xlane.xlu0 %2201
      %v2203 = vsel %vm962, %v2199, 0.0
      %2204 = vadd.xlane.f32.xlu0 %v2203
      %v2205 = vpop.xlane.xlu0 %2204
      %v2206 = vmul.f32 %v2202, %v2000
      %v2207 = vmul.f32 %v2205, %v2000
      %v2208 = vsub.f32 %v2198, %v2206
      %v2209 = vsub.f32 %v2199, %v2207
      %v2210 = vmul.f32 %v2208, %v2208
      %v2211 = vmul.f32 %v2209, %v2209
      %v2212 = vsel %vm962, %v2210, 0.0
      %2213 = vadd.xlane.f32.xlu0 %v2212
      %v2214 = vpop.xlane.xlu0 %2213
      %v2215 = vsel %vm962, %v2211, 0.0
      %2216 = vadd.xlane.f32.xlu0 %v2215
      %v2217 = vpop.xlane.xlu0 %2216
      %v2218 = vmul.f32 %v2214, %v2000
      %v2219 = vmul.f32 %v2217, %v2000
      %v2220 = vadd.f32 %v2218, 1e-05
      %v2221 = vadd.f32 %v2219, 1e-05
      %v2222 = vrsqrt.pop %v2220
      %v2223 = vrsqrt.pop %v2221
      %v2224 = vmul.f32 %v2208, %v2222
      %v2225 = vmul.f32 %v2209, %v2223
      %v2227 = vlaneseq
      %v2228 = vshrl.u32 %v2227, 7
      %v2229 = vsub.s32 0, %v2228
      %v2230 = vrot.slane %v941, %v2229
      %v2232 = vmul.f32 %v2224, %v2230
      %v2233 = vmul.f32 %v2225, %v2230
      %v2235 = vlaneseq
      %v2236 = vshrl.u32 %v2235, 7
      %v2237 = vsub.s32 0, %v2236
      %v2238 = vrot.slane %v942, %v2237
      %v2240 = vadd.f32 %v2232, %v2238
      %v2241 = vadd.f32 %v2233, %v2238
      %2242 = vst.msk [vmem:[#allocation2] sm:$0xff] %vm962, %v2240
      %2243 = vst.msk [vmem:[#allocation2 + $0x8] sm:$0xff] %vm962, %v2241
      %p2244 = scmp.eq.s32.totalorder %s33, 1
      // Predicated region
      $region93: #{tpu_custom_call.1} parent=87 // pred_check
        %p2245 = pneg %p2244
      $region94: #{tpu_custom_call.1} parent=87 // pred_check_branch
        %2247 = sbr.rel (%p2245) target = $region96
      $region95: #{tpu_custom_call.1} parent=87 // pred_region
        %v2248 = vpack.c.bf16 %v2241, %v2240
        %v2249 = vld [vmem:[%s16] sm:$0xf]
        %v2250 = vld [vmem:[%s16 + $0x4] sm:$0xf]
        %v2251 = vld [vmem:[%s16 + $0x8] sm:$0xf]
        %v2252 = vld [vmem:[%s16 + $0xc] sm:$0xf]
        %v2257 = vunpack.c.l.b16 %v2249
        %v2258 = vunpack.c.l.b16 %v2250
        %v2259 = vunpack.c.l.b16 %v2251
        %v2260 = vunpack.c.l.b16 %v2252
        %v2261 = vpack.c.b16 %v2258, %v2257
        %v2262 = vpack.c.b16 %v2260, %v2259
        %v2266 = vsel %vm962, %v2248, 0
        %2268 = vmatprep.subr.bf16.mxu0 0
        %2269 = vmatpush1.bf16.msra.mxu0 %v2261
        %2270 = vmatprep.subr.bf16.mxu0 0
        %2271 = vmatpush1.bf16.msra.mxu0 %v2262
        %2272 = vmatprep.subr.bf16.mxu0 0
        %2273 = vmatpush1.bf16.msra.mxu0 0
        %2274 = vmatprep.subr.bf16.mxu0 0
        %2275 = vmatpush1.bf16.msra.mxu0 0
        %2276 = vmatprep.subr.bf16.mxu0 0
        %2277 = vmatpush1.bf16.msra.mxu0 0
        %2278 = vmatprep.subr.bf16.mxu0 0
        %2279 = vmatpush1.bf16.msra.mxu0 0
        %2280 = vmatprep.subr.bf16.mxu0 0
        %2281 = vmatpush1.bf16.msra.mxu0 0
        %2282 = vmatprep.subr.bf16.mxu0 0
        %2283 = vmatpush1.bf16.msra.mxu0 0
        %2284 = vmatprep.subr.bf16.mxu0 0
        %2285 = vmatpush1.bf16.msra.mxu0 0
        %2286 = vmatprep.subr.bf16.mxu0 0
        %2287 = vmatpush1.bf16.msra.mxu0 0
        %2288 = vmatprep.subr.bf16.mxu0 0
        %2289 = vmatpush1.bf16.msra.mxu0 0
        %2290 = vmatprep.subr.bf16.mxu0 0
        %2291 = vmatpush1.bf16.msra.mxu0 0
        %2292 = vmatprep.subr.bf16.mxu0 0
        %2293 = vmatpush1.bf16.msra.mxu0 0
        %2294 = vmatprep.subr.bf16.mxu0 0
        %2295 = vmatpush1.bf16.msra.mxu0 0
        %2296 = vmatprep.subr.bf16.mxu0 0
        %2297 = vmatpush1.bf16.msra.mxu0 0
        %2298 = vmatprep.subr.bf16.mxu0 0
        %2299 = vmatpush1.bf16.msra.mxu0 0
        %2300 = vmatprep.mubr.bf16.mxu0 0
        %2301 = vmatmul.mubr.bf16.gmra.mrb[0].mxu0 %v2266
        %v2302 = vpop.f32.mrb[0].mxu0
        %v2303 = vadd.f32 0.0, %v2302
        %v2304 = vpop.f32.mrb[0].mxu0
        %v2305 = vpop.f32.mrb[0].mxu0
        %v2306 = vadd.f32 0.0, %v2305
        %v2307 = vpop.f32.mrb[0].mxu0
        %2308 = vdwg.mxu0
        %v2309 = vld [vmem:[%s717] sm:$0x1]
        %v2310 = vld [vmem:[%s717 + $0x1] sm:$0x1]
        %v2311 = vmul.f32 %v2309, %v2309
        %v2312 = vmul.f32 %v2310, %v2310
        %v2313 = vadd.f32 %v2311, 0.25
        %v2314 = vadd.f32 %v2312, 0.25
        %v2315 = vrcp.pop %v2313
        %v2316 = vmul.f32 0.25, %v2315
        %v2317 = vrcp.pop %v2314
        %v2318 = vmul.f32 0.25, %v2317
        %v2319 = vmul.f32 %v2309, 0.5
        %v2320 = vmul.f32 %v2310, 0.5
        %v2321 = vrsqrt.pop %v2313
        %v2322 = vrsqrt.pop %v2314
        %v2323 = vmul.f32 %v2319, %v2321
        %v2324 = vmul.f32 %v2320, %v2322
        %v2325 = vld [vmem:[%s723] sm:$0xff]
        %v2326 = vld [vmem:[%s723 + $0x8] sm:$0xff]
        %v2329 = vlaneseq
        %v2330 = vshrl.u32 %v2329, 7
        %v2331 = vsub.s32 0, %v2330
        %v2332 = vrot.slane %v2316, %v2331
        %v2333 = vlaneseq
        %v2334 = vshrl.u32 %v2333, 7
        %v2335 = vsub.s32 0, %v2334
        %v2336 = vrot.slane %v2318, %v2335
        %2337 = vset.pattern.permute.xlu0 0
        %2338 = vperm.xlu0 %2337, %v2332
        %v2339 = vpop.permute.xlu0 %2338
        %2341 = vset.pattern.permute.xlu0 0
        %2342 = vperm.xlu0 %2341, %v2336
        %v2343 = vpop.permute.xlu0 %2342
        %v2345 = vmul.f32 %v2339, %v2325
        %v2346 = vmul.f32 %v2343, %v2326
        %v2349 = vlaneseq
        %v2350 = vshrl.u32 %v2349, 7
        %v2351 = vsub.s32 0, %v2350
        %v2352 = vrot.slane %v2323, %v2351
        %v2353 = vlaneseq
        %v2354 = vshrl.u32 %v2353, 7
        %v2355 = vsub.s32 0, %v2354
        %v2356 = vrot.slane %v2324, %v2355
        %2357 = vset.pattern.permute.xlu0 0
        %2358 = vperm.xlu0 %2357, %v2352
        %v2359 = vpop.permute.xlu0 %2358
        %2361 = vset.pattern.permute.xlu0 0
        %2362 = vperm.xlu0 %2361, %v2356
        %v2363 = vpop.permute.xlu0 %2362
        %v2365 = vmul.f32 %v2359, %v2303
        %v2366 = vmul.f32 %v2363, %v2306
        %v2367 = vadd.f32 %v2345, %v2365
        %v2368 = vadd.f32 %v2346, %v2366
        %vm2369 = vcmask 31744
        %2370 = vst.msk [vmem:[%s773] sm:$0xff] %vm2369, %v2367
        %2371 = vst.msk [vmem:[%s773 + $0x8] sm:$0xff] %vm2369, %v2368
      $region96: #{tpu_custom_call.1} parent=87 // pred_fallthru
        _
      %s2372 = smul.u32 2, %s32
      %p2373 = scmp.lt.s32.totalorder %s2372, 1
      %s2374 = scalar_select %p2373, %s2372, 1
      %s2375 = smul.addr %s2374, 8
      %s2376 = scalar_lea.vmem %s17, %s2375
      // Predicated region
      $region97: #{tpu_custom_call.1} parent=87 // pred_check
        %p2377 = pneg %p485
      $region98: #{tpu_custom_call.1} parent=87 // pred_check_branch
        %2379 = sbr.rel (%p2377) target = $region100
      $region99: #{tpu_custom_call.1} parent=87 // pred_region
        %s2380 = smul.u32 2, %s32
      $region100: #{tpu_custom_call.1} parent=87 // pred_fallthru
        _
      // Predicated region
      $region101: #{tpu_custom_call.1} parent=87 // pred_check
        %p2381 = pneg %p485
      $region102: #{tpu_custom_call.1} parent=87 // pred_check_branch
        %2383 = sbr.rel (%p2381) target = $region104
      $region103: #{tpu_custom_call.1} parent=87 // pred_region
        %s2384 = smul.u32 2, %s32
        %p2385 = scmp.lt.s32.totalorder %s2384, 1
        %s2386 = scalar_select %p2385, %s2384, 1
        %s2387 = smul.addr %s2386, 8
        %s2388 = scalar_lea.vmem %s17, %s2387
      $region104: #{tpu_custom_call.1} parent=87 // pred_fallthru
        _
    $region88: #{tpu_custom_call.1} parent=5 // pred_fallthru
      _
    %p2389 = scmp.le.s32.totalorder 2, %s23
    // Predicated region
    $region105: #{tpu_custom_call.1} parent=5 // pred_check
      %p2390 = pneg %p2389
    $region106: #{tpu_custom_call.1} parent=5 // pred_check_branch
      %2392 = sbr.rel (%p2390) target = $region108
    $region107: #{tpu_custom_call.1} parent=5 // pred_region
      %s2393 = ssub.s32 %s23, 2
    $region108: #{tpu_custom_call.1} parent=5 // pred_fallthru
      _
  $region6: #{tpu_custom_call.1} parent=0 // loop_footer
    %s27 = sadd.s32 1, %s23
  $region7: #{tpu_custom_call.1} parent=0 // loop_footer_branch
    %22 = sbr.rel target = $region3
  $region8: #{tpu_custom_call.1} parent=0 // loop_exit
    _

</llo_original>
